<compile_context>
chip_gen: v6e
topology: v6e:2x2x1
jax: 0.10.0
libtpu: 0.0.40
codegen_flags: <defaults>
</compile_context>

<pallas_src>
import functools

import jax
import jax.numpy as jnp
from jax.experimental import pallas as pl
from jax.experimental.pallas import tpu as pltpu


# ---------------------------------------------------------------------------
# Kernel
# ---------------------------------------------------------------------------
def _conv3x3_kernel(xc_ref, xt_ref, xb_ref, w_ref, b_ref, o_ref, xs_ref, *, TH, W, relu):
    # xc_ref: (1, TH, W, Cin)   center rows of the tile (bf16)
    # xt_ref: (1, 1,  W, Cin)   row above the tile (clamped; zeroed via where at top edge)
    # xb_ref: (1, 1,  W, Cin)   row below the tile (clamped; zeroed via where at bottom edge)
    # w_ref:  (3, 3, Cin, Cout) BN-folded conv weights (bf16), resident in VMEM
    # b_ref:  (1, Cout)         folded bias (f32)
    # o_ref:  (1, TH, W, Cout)
    # xs_ref: (TH+2, W, Cin)    VMEM scratch holding the row-extended tile
    i = pl.program_id(1)
    nt = pl.num_programs(1)
    Cin = xc_ref.shape[3]
    Cout = w_ref.shape[3]
    dt = xc_ref.dtype

    # --- Stage the row-extended tile into the scratch (axis-0 slices = address offsets).
    xs_ref[pl.ds(1, TH)] = xc_ref[0]
    zero_row = jnp.zeros((1, W, Cin), dt)
    xs_ref[pl.ds(0, 1)] = jnp.where(i > 0, xt_ref[0], zero_row)
    xs_ref[pl.ds(TH + 1, 1)] = jnp.where(i < nt - 1, xb_ref[0], zero_row)

    x0 = xs_ref[...]                                          # (TH+2, W, Cin), dx = 0 source

    # --- dx = -1 / +1 sources, built once per step on the extended tile.
    zcol = jnp.zeros((TH + 2, 1, Cin), dt)
    xm = jnp.concatenate([zcol, x0[:, :W - 1, :]], axis=1)    # value at w-1 (zero at w=0)
    xp = jnp.concatenate([x0[:, 1:, :], zcol], axis=1)        # value at w+1 (zero at w=W-1)

    # 2D views: merging the leading dims is layout-free when W % 8 == 0.
    M2 = (TH + 2) * W
    M = TH * W
    taps = (xm.reshape(M2, Cin), x0.reshape(M2, Cin), xp.reshape(M2, Cin))

    # --- 9 MXU dots of K=Cin, f32 accumulation; dy taps are row-offset slices.
    acc = None
    for ky in range(3):
        lo = ky * W
        for kx in range(3):
            part = jnp.dot(taps[kx][lo:lo + M], w_ref[ky, kx],
                           preferred_element_type=jnp.float32)
            acc = part if acc is None else acc + part

    y = acc + b_ref[...]                                      # f32 epilogue
    if relu:
        y = jnp.maximum(y, 0.0)
    o_ref[0] = y.reshape(TH, W, Cout).astype(o_ref.dtype)


# ---------------------------------------------------------------------------
# Tile / VMEM budgeting
# ---------------------------------------------------------------------------
def _vmem_capacity_bytes():
    try:
        info = pltpu.get_tpu_info()
        cap = getattr(info, "vmem_capacity_bytes", None)
        if cap:
            return int(cap)
    except Exception:
        pass
    return 64 * 1024 * 1024  # conservative default (v7x-sized)


def _step_bytes(th, W, Cin, Cout):
    """Rough per-grid-step VMEM working set for tile height `th`."""
    bpe = 2  # bf16 activations / weights
    blocks = 2 * th * W * Cin * bpe + 2 * th * W * Cout * bpe + 4 * W * Cin * bpe  # dbl-buffered I/O
    scratch = (th + 2) * W * Cin * bpe
    temps = 2 * (th + 2) * W * Cin * bpe + th * W * Cout * 4                        # xm/xp + f32 acc
    weights = 9 * Cin * Cout * bpe + 4 * Cout
    return blocks + scratch + temps + weights


def _pick_tile_h(N, H, W, Cin, Cout, tile_budget):
    divs = sorted((d for d in range(1, H + 1) if H % d == 0), reverse=True)
    th = None
    for d in divs:
        if _step_bytes(d, W, Cin, Cout) <= tile_budget:
            th = d
            break
    if th is None:
        th = 1
    # Keep at least 2 parallel grid steps (v7x has 2 TensorCores per chip).
    if N * (H // th) < 2:
        smaller = [d for d in divs if d < th]
        if smaller:
            th = smaller[0]
    return th


# ---------------------------------------------------------------------------
# One DnCNN layer: 3x3 conv (pad=1, BN-scale folded) + bias + optional ReLU
# ---------------------------------------------------------------------------
def conv3x3_layer(x_nhwc, w, bias, *, relu, tile_h=None):
    N, H, W, Cin = x_nhwc.shape
    Cout = w.shape[3]

    vmem_cap = _vmem_capacity_bytes()
    vmem_limit = min(vmem_cap * 3 // 4, 96 * 1024 * 1024)   # ~48 MiB on v7x, ~96 MiB on v5e/v6e
    if tile_h is None:
        tile_h = _pick_tile_h(N, H, W, Cin, Cout, vmem_limit // 2)
    assert H % tile_h == 0 and tile_h >= 1, (H, tile_h)
    n_tiles = H // tile_h

    kernel = functools.partial(_conv3x3_kernel, TH=tile_h, W=W, relu=relu)

    return pl.pallas_call(
        kernel,
        out_shape=jax.ShapeDtypeStruct((N, H, W, Cout), x_nhwc.dtype),
        grid=(N, n_tiles),
        in_specs=[
            # Center rows of the tile.
            pl.BlockSpec((1, tile_h, W, Cin), lambda n, i: (n, i, 0, 0)),
            # Halo row above (clamped; where-masked in-kernel when i == 0).
            pl.BlockSpec((1, 1, W, Cin),
                         lambda n, i: (n, jnp.maximum(i * tile_h - 1, 0), 0, 0)),
            # Halo row below (clamped; where-masked in-kernel when i == last tile).
            pl.BlockSpec((1, 1, W, Cin),
                         lambda n, i: (n, jnp.minimum(i * tile_h + tile_h, H - 1), 0, 0)),
            # Weights / bias: constant index_map -> resident in VMEM across the grid.
            pl.BlockSpec((3, 3, Cin, Cout), lambda n, i: (0, 0, 0, 0)),
            pl.BlockSpec((1, Cout), lambda n, i: (0, 0)),
        ],
        out_specs=pl.BlockSpec((1, tile_h, W, Cout), lambda n, i: (n, i, 0, 0)),
        scratch_shapes=[pltpu.VMEM((tile_h + 2, W, Cin), x_nhwc.dtype)],
        compiler_params=pltpu.CompilerParams(
            dimension_semantics=("parallel", "parallel"),
            vmem_limit_bytes=int(vmem_limit)),
    )(x_nhwc, x_nhwc, x_nhwc, w, bias)


# ---------------------------------------------------------------------------
# Parameters (deterministic synthetic, matching DnCNN.__init__ shapes)
# ---------------------------------------------------------------------------
def init_dncnn_params(key, channels, num_of_layers=17, features=64):
    eps = 1e-5

    def conv_w(k, cin, cout):
        bound = 1.0 / jnp.sqrt(jnp.float32(cin * 9))
        return jax.random.uniform(k, (3, 3, cin, cout), jnp.float32, -bound, bound)

    keys = jax.random.split(key, 3 * num_of_layers)
    ki = 0
    params = []

    # Layer 0: Conv(channels -> features) + ReLU, no BN.
    w = conv_w(keys[ki], channels, features); ki += 1
    params.append(dict(w=w,
                       scale=jnp.ones((features,), jnp.float32),
                       bias=jnp.zeros((features,), jnp.float32),
                       relu=True))

    # Middle layers: Conv(features -> features) + BatchNorm2d + ReLU.
    # BN folded in inference mode (running_mean=0, running_var=1).
    for _ in range(num_of_layers - 2):
        w = conv_w(keys[ki], features, features); ki += 1
        gamma = 1.0 + 0.1 * jax.random.normal(keys[ki], (features,), jnp.float32); ki += 1
        beta = 0.1 * jax.random.normal(keys[ki], (features,), jnp.float32); ki += 1
        scale = gamma / jnp.sqrt(1.0 + eps)   # running_var = 1
        bias = beta                           # running_mean = 0
        params.append(dict(w=w, scale=scale, bias=bias, relu=True))

    # Last layer: Conv(features -> channels), no BN, no ReLU.
    w = conv_w(keys[ki], features, channels); ki += 1
    params.append(dict(w=w,
                       scale=jnp.ones((channels,), jnp.float32),
                       bias=jnp.zeros((channels,), jnp.float32),
                       relu=False))
    return params


def _prepare_layer(p):
    """Fold BN scale into the conv weights, cast to bf16."""
    w = (p["w"] * p["scale"].reshape(1, 1, 1, -1)).astype(jnp.bfloat16)   # (3, 3, Cin, Cout)
    bias = p["bias"].reshape(1, -1).astype(jnp.float32)
    return w, bias, p["relu"]


# ---------------------------------------------------------------------------
# Forward passes
# ---------------------------------------------------------------------------
def dncnn_forward(x_nchw, params, *, tile_h=None):
    x = jnp.transpose(x_nchw, (0, 2, 3, 1)).astype(jnp.bfloat16)   # NCHW -> NHWC, bf16
    for p in params:
        w, bias, relu = _prepare_layer(p)
        x = conv3x3_layer(x, w, bias, relu=relu, tile_h=tile_h)
    return jnp.transpose(x, (0, 3, 1, 2)).astype(jnp.float32)      # NHWC -> NCHW


def dncnn_reference(x_nchw, params):
    """Pure-JAX reference (lax.conv) using the same folded bf16 weights / bf16 activations."""
    x = jnp.transpose(x_nchw, (0, 2, 3, 1)).astype(jnp.bfloat16)
    for p in params:
        w, bias, relu = _prepare_layer(p)
        Cout = w.shape[3]
        y = jax.lax.conv_general_dilated(
            x, w, window_strides=(1, 1), padding=((1, 1), (1, 1)),
            dimension_numbers=("NHWC", "HWIO", "NHWC"),
            preferred_element_type=jnp.float32)
        y = y + bias.reshape(1, 1, 1, Cout)
        if relu:
            y = jnp.maximum(y, 0.0)
        x = y.astype(jnp.bfloat16)
    return jnp.transpose(x, (0, 3, 1, 2)).astype(jnp.float32)


if __name__ == "__main__":
    key = jax.random.PRNGKey(0)
    k_x, k_p = jax.random.split(key)

    # Small test shapes: batch=2, channels=4, spatial=16x16, 5 layers.
    N, C, H, W = 2, 4, 16, 16
    num_of_layers = 5

    x = jax.random.normal(k_x, (N, C, H, W), jnp.float32)
    params = init_dncnn_params(k_p, channels=C, num_of_layers=num_of_layers)

    ref = jax.block_until_ready(dncnn_reference(x, params))

    # tile_h=8 -> 2 row tiles per image: exercises halo fetch + border masking.
    out_tiled = jax.block_until_ready(dncnn_forward(x, params, tile_h=8))
    # Auto tile selection (VMEM-budgeted; single 16-row tile at this size).
    out_auto = jax.block_until_ready(dncnn_forward(x, params))

    assert out_tiled.shape == (N, C, H, W), out_tiled.shape
    for out in (out_tiled, out_auto):
        assert jnp.allclose(out, ref, atol=5e-2, rtol=5e-2), float(jnp.max(jnp.abs(out - ref)))

    print("KERNEL_OK")
</pallas_src>

<mosaic_0001>
module attributes {stable_mosaic.version = 11 : i64} {
  func.func @_conv3x3_kernel(%arg0: i32, %arg1: i32, %arg2: memref<1x8x16x4xbf16, #tpu.memory_space<vmem>>, %arg3: memref<1x1x16x4xbf16, #tpu.memory_space<vmem>>, %arg4: memref<1x1x16x4xbf16, #tpu.memory_space<vmem>>, %arg5: memref<3x3x4x64xbf16, #tpu.memory_space<vmem>>, %arg6: memref<1x64xf32, #tpu.memory_space<vmem>>, %arg7: memref<1x8x16x64xbf16, #tpu.memory_space<vmem>>, %arg8: memref<10x16x4xbf16, #tpu.memory_space<vmem>>) attributes {dimension_semantics = [#tpu.dimension_semantics<parallel>, #tpu.dimension_semantics<parallel>], iteration_bounds = array<i64: 2, 2>, scalar_prefetch = 0 : i64, scratch_operands = 1 : i64, tpu.core_type = #tpu.core_type<tc>, window_params = [{transform_indices = @transform_0, window_bounds = array<i64: 1, 8, 16, 4>}, {transform_indices = @transform_1, window_bounds = array<i64: 1, 1, 16, 4>}, {transform_indices = @transform_2, window_bounds = array<i64: 1, 1, 16, 4>}, {pipeline_mode = #tpu.pipeline_mode<synchronous>, transform_indices = @transform_3, window_bounds = array<i64: 3, 3, 4, 64>}, {pipeline_mode = #tpu.pipeline_mode<synchronous>, transform_indices = @transform_4, window_bounds = array<i64: 1, 64>}, {transform_indices = @transform_5, window_bounds = array<i64: 1, 8, 16, 64>}]} {
    %c0 = arith.constant 0 : index
    %c0_0 = arith.constant 0 : index
    %c0_1 = arith.constant 0 : index
    %c0_2 = arith.constant 0 : index
    %0 = vector.load %arg2[%c0, %c0_0, %c0_1, %c0_2] : memref<1x8x16x4xbf16, #tpu.memory_space<vmem>>, vector<1x8x16x4xbf16>
    %1 = vector.shape_cast %0 : vector<1x8x16x4xbf16> to vector<8x16x4xbf16>
    %c1 = arith.constant 1 : index
    %c0_3 = arith.constant 0 : index
    %c0_4 = arith.constant 0 : index
    %2 = vector.load %arg8[%c1, %c0_3, %c0_4] : memref<10x16x4xbf16, #tpu.memory_space<vmem>>, vector<8x16x4xbf16>
    tpu.vector_store %arg8[%c1, %c0_3, %c0_4], %1 {strides = array<i32>} : memref<10x16x4xbf16, #tpu.memory_space<vmem>>, vector<8x16x4xbf16>,
    %cst = arith.constant 0.000000e+00 : bf16
    %3 = vector.broadcast %cst : bf16 to vector<1x16x4xbf16>
    %c0_i32 = arith.constant 0 : i32
    %4 = arith.cmpi sgt, %arg1, %c0_i32 : i32
    %c0_5 = arith.constant 0 : index
    %c0_6 = arith.constant 0 : index
    %c0_7 = arith.constant 0 : index
    %c0_8 = arith.constant 0 : index
    %5 = vector.load %arg3[%c0_5, %c0_6, %c0_7, %c0_8] : memref<1x1x16x4xbf16, #tpu.memory_space<vmem>>, vector<1x1x16x4xbf16>
    %6 = vector.shape_cast %5 : vector<1x1x16x4xbf16> to vector<1x16x4xbf16>
    %7 = arith.select %4, %6, %3 : vector<1x16x4xbf16>
    %c0_9 = arith.constant 0 : index
    %c0_10 = arith.constant 0 : index
    %c0_11 = arith.constant 0 : index
    %8 = vector.load %arg8[%c0_9, %c0_10, %c0_11] : memref<10x16x4xbf16, #tpu.memory_space<vmem>>, vector<1x16x4xbf16>
    tpu.vector_store %arg8[%c0_9, %c0_10, %c0_11], %7 {strides = array<i32>} : memref<10x16x4xbf16, #tpu.memory_space<vmem>>, vector<1x16x4xbf16>,
    %c1_i32 = arith.constant 1 : i32
    %9 = arith.cmpi slt, %arg1, %c1_i32 : i32
    %c0_12 = arith.constant 0 : index
    %c0_13 = arith.constant 0 : index
    %c0_14 = arith.constant 0 : index
    %c0_15 = arith.constant 0 : index
    %10 = vector.load %arg4[%c0_12, %c0_13, %c0_14, %c0_15] : memref<1x1x16x4xbf16, #tpu.memory_space<vmem>>, vector<1x1x16x4xbf16>
    %11 = vector.shape_cast %10 : vector<1x1x16x4xbf16> to vector<1x16x4xbf16>
    %12 = arith.select %9, %11, %3 : vector<1x16x4xbf16>
    %c9 = arith.constant 9 : index
    %c0_16 = arith.constant 0 : index
    %c0_17 = arith.constant 0 : index
    %13 = vector.load %arg8[%c9, %c0_16, %c0_17] : memref<10x16x4xbf16, #tpu.memory_space<vmem>>, vector<1x16x4xbf16>
    tpu.vector_store %arg8[%c9, %c0_16, %c0_17], %12 {strides = array<i32>} : memref<10x16x4xbf16, #tpu.memory_space<vmem>>, vector<1x16x4xbf16>,
    %c0_18 = arith.constant 0 : index
    %c0_19 = arith.constant 0 : index
    %c0_20 = arith.constant 0 : index
    %14 = vector.load %arg8[%c0_18, %c0_19, %c0_20] : memref<10x16x4xbf16, #tpu.memory_space<vmem>>, vector<10x16x4xbf16>
    %cst_21 = arith.constant 0.000000e+00 : bf16
    %15 = vector.broadcast %cst_21 : bf16 to vector<10x1x4xbf16>
    %16 = vector.extract_strided_slice %14 {offsets = [0, 0, 0], sizes = [10, 15, 4], strides = [1, 1, 1]} : vector<10x16x4xbf16> to vector<10x15x4xbf16>
    %17 = tpu.concatenate %15, %16 in 1 : vector<10x1x4xbf16>, vector<10x15x4xbf16> -> vector<10x16x4xbf16>
    %18 = vector.extract_strided_slice %14 {offsets = [0, 1, 0], sizes = [10, 15, 4], strides = [1, 1, 1]} : vector<10x16x4xbf16> to vector<10x15x4xbf16>
    %19 = tpu.concatenate %18, %15 in 1 : vector<10x15x4xbf16>, vector<10x1x4xbf16> -> vector<10x16x4xbf16>
    %20 = vector.shape_cast %17 : vector<10x16x4xbf16> to vector<160x4xbf16>
    %21 = vector.shape_cast %14 : vector<10x16x4xbf16> to vector<160x4xbf16>
    %22 = vector.shape_cast %19 : vector<10x16x4xbf16> to vector<160x4xbf16>
    %23 = vector.extract_strided_slice %20 {offsets = [0, 0], sizes = [128, 4], strides = [1, 1]} : vector<160x4xbf16> to vector<128x4xbf16>
    %c0_22 = arith.constant 0 : index
    %c0_23 = arith.constant 0 : index
    %c0_24 = arith.constant 0 : index
    %c0_25 = arith.constant 0 : index
    %24 = vector.load %arg5[%c0_22, %c0_23, %c0_24, %c0_25] : memref<3x3x4x64xbf16, #tpu.memory_space<vmem>>, vector<1x1x4x64xbf16>
    %25 = vector.shape_cast %24 : vector<1x1x4x64xbf16> to vector<4x64xbf16>
    %cst_26 = arith.constant dense<0.000000e+00> : vector<128x64xf32>
    %26 = tpu.matmul %23, %25, %cst_26 {dimension_numbers = #tpu.dot_dimension_numbers<[1], [0], [0], [1], [0, 0, 1, 1], [], []>} : vector<128x4xbf16>, vector<4x64xbf16>, vector<128x64xf32> -> vector<128x64xf32>
    %27 = vector.extract_strided_slice %21 {offsets = [0, 0], sizes = [128, 4], strides = [1, 1]} : vector<160x4xbf16> to vector<128x4xbf16>
    %c0_27 = arith.constant 0 : index
    %c1_28 = arith.constant 1 : index
    %c0_29 = arith.constant 0 : index
    %c0_30 = arith.constant 0 : index
    %28 = vector.load %arg5[%c0_27, %c1_28, %c0_29, %c0_30] : memref<3x3x4x64xbf16, #tpu.memory_space<vmem>>, vector<1x1x4x64xbf16>
    %29 = vector.shape_cast %28 : vector<1x1x4x64xbf16> to vector<4x64xbf16>
    %cst_31 = arith.constant dense<0.000000e+00> : vector<128x64xf32>
    %30 = tpu.matmul %27, %29, %cst_31 {dimension_numbers = #tpu.dot_dimension_numbers<[1], [0], [0], [1], [0, 0, 1, 1], [], []>} : vector<128x4xbf16>, vector<4x64xbf16>, vector<128x64xf32> -> vector<128x64xf32>
    %31 = arith.addf %26, %30 : vector<128x64xf32>
    %32 = vector.extract_strided_slice %22 {offsets = [0, 0], sizes = [128, 4], strides = [1, 1]} : vector<160x4xbf16> to vector<128x4xbf16>
    %c0_32 = arith.constant 0 : index
    %c2 = arith.constant 2 : index
    %c0_33 = arith.constant 0 : index
    %c0_34 = arith.constant 0 : index
    %33 = vector.load %arg5[%c0_32, %c2, %c0_33, %c0_34] : memref<3x3x4x64xbf16, #tpu.memory_space<vmem>>, vector<1x1x4x64xbf16>
    %34 = vector.shape_cast %33 : vector<1x1x4x64xbf16> to vector<4x64xbf16>
    %cst_35 = arith.constant dense<0.000000e+00> : vector<128x64xf32>
    %35 = tpu.matmul %32, %34, %cst_35 {dimension_numbers = #tpu.dot_dimension_numbers<[1], [0], [0], [1], [0, 0, 1, 1], [], []>} : vector<128x4xbf16>, vector<4x64xbf16>, vector<128x64xf32> -> vector<128x64xf32>
    %36 = arith.addf %31, %35 : vector<128x64xf32>
    %37 = vector.extract_strided_slice %20 {offsets = [16, 0], sizes = [128, 4], strides = [1, 1]} : vector<160x4xbf16> to vector<128x4xbf16>
    %c1_36 = arith.constant 1 : index
    %c0_37 = arith.constant 0 : index
    %c0_38 = arith.constant 0 : index
    %c0_39 = arith.constant 0 : index
    %38 = vector.load %arg5[%c1_36, %c0_37, %c0_38, %c0_39] : memref<3x3x4x64xbf16, #tpu.memory_space<vmem>>, vector<1x1x4x64xbf16>
    %39 = vector.shape_cast %38 : vector<1x1x4x64xbf16> to vector<4x64xbf16>
    %cst_40 = arith.constant dense<0.000000e+00> : vector<128x64xf32>
    %40 = tpu.matmul %37, %39, %cst_40 {dimension_numbers = #tpu.dot_dimension_numbers<[1], [0], [0], [1], [0, 0, 1, 1], [], []>} : vector<128x4xbf16>, vector<4x64xbf16>, vector<128x64xf32> -> vector<128x64xf32>
    %41 = arith.addf %36, %40 : vector<128x64xf32>
    %42 = vector.extract_strided_slice %21 {offsets = [16, 0], sizes = [128, 4], strides = [1, 1]} : vector<160x4xbf16> to vector<128x4xbf16>
    %c1_41 = arith.constant 1 : index
    %c1_42 = arith.constant 1 : index
    %c0_43 = arith.constant 0 : index
    %c0_44 = arith.constant 0 : index
    %43 = vector.load %arg5[%c1_41, %c1_42, %c0_43, %c0_44] : memref<3x3x4x64xbf16, #tpu.memory_space<vmem>>, vector<1x1x4x64xbf16>
    %44 = vector.shape_cast %43 : vector<1x1x4x64xbf16> to vector<4x64xbf16>
    %cst_45 = arith.constant dense<0.000000e+00> : vector<128x64xf32>
    %45 = tpu.matmul %42, %44, %cst_45 {dimension_numbers = #tpu.dot_dimension_numbers<[1], [0], [0], [1], [0, 0, 1, 1], [], []>} : vector<128x4xbf16>, vector<4x64xbf16>, vector<128x64xf32> -> vector<128x64xf32>
    %46 = arith.addf %41, %45 : vector<128x64xf32>
    %47 = vector.extract_strided_slice %22 {offsets = [16, 0], sizes = [128, 4], strides = [1, 1]} : vector<160x4xbf16> to vector<128x4xbf16>
    %c1_46 = arith.constant 1 : index
    %c2_47 = arith.constant 2 : index
    %c0_48 = arith.constant 0 : index
    %c0_49 = arith.constant 0 : index
    %48 = vector.load %arg5[%c1_46, %c2_47, %c0_48, %c0_49] : memref<3x3x4x64xbf16, #tpu.memory_space<vmem>>, vector<1x1x4x64xbf16>
    %49 = vector.shape_cast %48 : vector<1x1x4x64xbf16> to vector<4x64xbf16>
    %cst_50 = arith.constant dense<0.000000e+00> : vector<128x64xf32>
    %50 = tpu.matmul %47, %49, %cst_50 {dimension_numbers = #tpu.dot_dimension_numbers<[1], [0], [0], [1], [0, 0, 1, 1], [], []>} : vector<128x4xbf16>, vector<4x64xbf16>, vector<128x64xf32> -> vector<128x64xf32>
    %51 = arith.addf %46, %50 : vector<128x64xf32>
    %52 = vector.extract_strided_slice %20 {offsets = [32, 0], sizes = [128, 4], strides = [1, 1]} : vector<160x4xbf16> to vector<128x4xbf16>
    %c2_51 = arith.constant 2 : index
    %c0_52 = arith.constant 0 : index
    %c0_53 = arith.constant 0 : index
    %c0_54 = arith.constant 0 : index
    %53 = vector.load %arg5[%c2_51, %c0_52, %c0_53, %c0_54] : memref<3x3x4x64xbf16, #tpu.memory_space<vmem>>, vector<1x1x4x64xbf16>
    %54 = vector.shape_cast %53 : vector<1x1x4x64xbf16> to vector<4x64xbf16>
    %cst_55 = arith.constant dense<0.000000e+00> : vector<128x64xf32>
    %55 = tpu.matmul %52, %54, %cst_55 {dimension_numbers = #tpu.dot_dimension_numbers<[1], [0], [0], [1], [0, 0, 1, 1], [], []>} : vector<128x4xbf16>, vector<4x64xbf16>, vector<128x64xf32> -> vector<128x64xf32>
    %56 = arith.addf %51, %55 : vector<128x64xf32>
    %57 = vector.extract_strided_slice %21 {offsets = [32, 0], sizes = [128, 4], strides = [1, 1]} : vector<160x4xbf16> to vector<128x4xbf16>
    %c2_56 = arith.constant 2 : index
    %c1_57 = arith.constant 1 : index
    %c0_58 = arith.constant 0 : index
    %c0_59 = arith.constant 0 : index
    %58 = vector.load %arg5[%c2_56, %c1_57, %c0_58, %c0_59] : memref<3x3x4x64xbf16, #tpu.memory_space<vmem>>, vector<1x1x4x64xbf16>
    %59 = vector.shape_cast %58 : vector<1x1x4x64xbf16> to vector<4x64xbf16>
    %cst_60 = arith.constant dense<0.000000e+00> : vector<128x64xf32>
    %60 = tpu.matmul %57, %59, %cst_60 {dimension_numbers = #tpu.dot_dimension_numbers<[1], [0], [0], [1], [0, 0, 1, 1], [], []>} : vector<128x4xbf16>, vector<4x64xbf16>, vector<128x64xf32> -> vector<128x64xf32>
    %61 = arith.addf %56, %60 : vector<128x64xf32>
    %62 = vector.extract_strided_slice %22 {offsets = [32, 0], sizes = [128, 4], strides = [1, 1]} : vector<160x4xbf16> to vector<128x4xbf16>
    %c2_61 = arith.constant 2 : index
    %c2_62 = arith.constant 2 : index
    %c0_63 = arith.constant 0 : index
    %c0_64 = arith.constant 0 : index
    %63 = vector.load %arg5[%c2_61, %c2_62, %c0_63, %c0_64] : memref<3x3x4x64xbf16, #tpu.memory_space<vmem>>, vector<1x1x4x64xbf16>
    %64 = vector.shape_cast %63 : vector<1x1x4x64xbf16> to vector<4x64xbf16>
    %cst_65 = arith.constant dense<0.000000e+00> : vector<128x64xf32>
    %65 = tpu.matmul %62, %64, %cst_65 {dimension_numbers = #tpu.dot_dimension_numbers<[1], [0], [0], [1], [0, 0, 1, 1], [], []>} : vector<128x4xbf16>, vector<4x64xbf16>, vector<128x64xf32> -> vector<128x64xf32>
    %66 = arith.addf %61, %65 : vector<128x64xf32>
    %c0_66 = arith.constant 0 : index
    %c0_67 = arith.constant 0 : index
    %67 = vector.load %arg6[%c0_66, %c0_67] : memref<1x64xf32, #tpu.memory_space<vmem>>, vector<1x64xf32>
    %68 = vector.broadcast %67 : vector<1x64xf32> to vector<128x64xf32>
    %69 = arith.addf %66, %68 : vector<128x64xf32>
    %cst_68 = arith.constant 0.000000e+00 : f32
    %70 = vector.broadcast %cst_68 : f32 to vector<128x64xf32>
    %71 = arith.maximumf %69, %70 : vector<128x64xf32>
    %72 = vector.shape_cast %71 : vector<128x64xf32> to vector<8x16x64xf32>
    %73 = arith.truncf %72 : vector<8x16x64xf32> to vector<8x16x64xbf16>
    %c0_69 = arith.constant 0 : index
    %c0_70 = arith.constant 0 : index
    %c0_71 = arith.constant 0 : index
    %c0_72 = arith.constant 0 : index
    %74 = vector.load %arg7[%c0_69, %c0_70, %c0_71, %c0_72] : memref<1x8x16x64xbf16, #tpu.memory_space<vmem>>, vector<1x8x16x64xbf16>
    %75 = vector.shape_cast %74 : vector<1x8x16x64xbf16> to vector<8x16x64xbf16>
    %76 = vector.shape_cast %73 : vector<8x16x64xbf16> to vector<1x8x16x64xbf16>
    tpu.vector_store %arg7[%c0_69, %c0_70, %c0_71, %c0_72], %76 {strides = array<i32>} : memref<1x8x16x64xbf16, #tpu.memory_space<vmem>>, vector<1x8x16x64xbf16>,
    return
  }
  func.func @transform_0(%arg0: i32, %arg1: i32) -> (i32, i32, i32, i32) {
    %c0_i32 = arith.constant 0 : i32
    %c0_i32_0 = arith.constant 0 : i32
    %c0_i32_1 = arith.constant 0 : i32
    return %arg0, %arg1, %c0_i32, %c0_i32_0 : i32, i32, i32, i32
  }
  func.func @transform_1(%arg0: i32, %arg1: i32) -> (i32, i32, i32, i32) {
    %c8_i32 = arith.constant 8 : i32
    %0 = arith.muli %arg1, %c8_i32 : i32
    %c1_i32 = arith.constant 1 : i32
    %1 = arith.subi %0, %c1_i32 : i32
    %c0_i32 = arith.constant 0 : i32
    %2 = arith.maxsi %1, %c0_i32 : i32
    %c0_i32_0 = arith.constant 0 : i32
    %c0_i32_1 = arith.constant 0 : i32
    %c0_i32_2 = arith.constant 0 : i32
    return %arg0, %2, %c0_i32_0, %c0_i32_1 : i32, i32, i32, i32
  }
  func.func @transform_2(%arg0: i32, %arg1: i32) -> (i32, i32, i32, i32) {
    %c8_i32 = arith.constant 8 : i32
    %0 = arith.muli %arg1, %c8_i32 : i32
    %c8_i32_0 = arith.constant 8 : i32
    %1 = arith.addi %0, %c8_i32_0 : i32
    %c15_i32 = arith.constant 15 : i32
    %2 = arith.minsi %1, %c15_i32 : i32
    %c0_i32 = arith.constant 0 : i32
    %c0_i32_1 = arith.constant 0 : i32
    %c0_i32_2 = arith.constant 0 : i32
    return %arg0, %2, %c0_i32, %c0_i32_1 : i32, i32, i32, i32
  }
  func.func @transform_3(%arg0: i32, %arg1: i32) -> (i32, i32, i32, i32) {
    %c0_i32 = arith.constant 0 : i32
    %c0_i32_0 = arith.constant 0 : i32
    %c0_i32_1 = arith.constant 0 : i32
    %c0_i32_2 = arith.constant 0 : i32
    %c0_i32_3 = arith.constant 0 : i32
    return %c0_i32, %c0_i32_0, %c0_i32_1, %c0_i32_2 : i32, i32, i32, i32
  }
  func.func @transform_4(%arg0: i32, %arg1: i32) -> (i32, i32) {
    %c0_i32 = arith.constant 0 : i32
    %c0_i32_0 = arith.constant 0 : i32
    %c0_i32_1 = arith.constant 0 : i32
    return %c0_i32, %c0_i32_0 : i32, i32
  }
  func.func @transform_5(%arg0: i32, %arg1: i32) -> (i32, i32, i32, i32) {
    %c0_i32 = arith.constant 0 : i32
    %c0_i32_0 = arith.constant 0 : i32
    %c0_i32_1 = arith.constant 0 : i32
    return %arg0, %arg1, %c0_i32, %c0_i32_0 : i32, i32, i32, i32
  }
}

</mosaic_0001>

<llo_original>
// kernel: tpu_custom_call.1
$region0: #{tpu_custom_call.1}
  #allocation0 [shape = 'u32[]', space=smem, size = 0x4, offset = 0x4, fixed_abs, tag = 'smem constant byte address 0x4 - core index']
  #allocation1 [shape = 'u32[144,128]{1,0:T(1,128)}', space=vmem, size = 0x12000, scoped, tag = 'internal scratch']
  #allocation2 [shape = 'bf16[10,16,4]{2,1,0:T(8,128)(2,1)}', space=vmem, size = 0xa000, scoped, tag = 'scratch operand']
  %s0 = inlined_call_operand.vmem [shape: bf16[2,16,16,4], index: 0, kind: input, shape index: {}]
  %s1 = inlined_call_operand.vmem [shape: bf16[2,16,16,4], index: 1, kind: input, shape index: {}]
  %s2 = inlined_call_operand.vmem [shape: bf16[2,16,16,4], index: 2, kind: input, shape index: {}]
  %s3 = inlined_call_operand.vmem [shape: bf16[3,3,4,64], index: 3, kind: input, shape index: {}]
  %s4 = inlined_call_operand.vmem [shape: f32[1,64], index: 4, kind: input, shape index: {}]
  %s5 = inlined_call_operand.hbm [shape: bf16[2,16,16,64], index: 5, kind: output, shape index: {}]
  %s6 = sld [smem:[#allocation0]]
  $region53: #{tpu_custom_call.1} parent=0
    _
  %s8 = ssub.s32 1, %s6
  %s9 = scalar_select 0, %s8, %s6
  $region1: #{tpu_custom_call.1} parent=0
    #allocation3 [shape = 'u8[65536]{0}', space=vmem, size = 0x10000, scoped, tag = 'output window, operand 0']
    #allocation4 [shape = 's32[2]{0}', space=sflag, size = 0x8, scoped, tag = 'scoped memory for tpu_custom_call.1']
    %10 = vsyncpa [#allocation4], 0
    %s11 = scalar_lea.sflag [#allocation4], 1
    %12 = vsyncpa %s11, 0
    loop: start=0, step=1, limit=6
    $region2: #{tpu_custom_call.1} parent=1 // loop_pre_header
      _
    $region3: #{tpu_custom_call.1} parent=1 // loop_header
      %s14 = sphi 0, %s18
      %p15 = scmp.ge.s32.totalorder %s14, 6
      %s21 = sphi 0, %s33
      %s22 = sphi 0, %s29
      %s23 = sphi 0, %s21
      %s24 = sphi 0, %s22
      %s25 = sphi 0, %s23
      %s26 = sphi 0, %s24
      %s38 = sphi 0, %s40
      %s41 = sphi 0, %s38
      %s42 = sphi 0, %s41
      %s58 = sphi 0, %s42
      %s74 = sphi 0, %s76
      %s77 = sphi 0, %s74
      %s78 = sphi 0, %s77
      %s94 = sphi 0, %s78
      %s110 = sphi 0, %s112
      %s113 = sphi 0, %s110
      %s114 = sphi 0, %s113
      %s130 = sphi 0, %s114
      %s134 = sphi 0, %s134
      %s136 = sphi 0, %s134
      %s137 = sphi 0, %s136
      %s151 = sphi 0, %s137
      %s155 = sphi 0, %s155
      %s157 = sphi 0, %s155
      %s158 = sphi 0, %s157
      %s172 = sphi 0, %s158
      %s180 = sphi 0, %s182
      %s183 = sphi 0, %s180
      %s184 = sphi 0, %s183
      %s200 = sphi 0, %s184
    $region4: #{tpu_custom_call.1} parent=1 // loop_header_branch
      %17 = sbr.rel (%p15) target = $region8
    $region5: #{tpu_custom_call.1} parent=1 // loop_body
      %s19 = ssub.s32 %s14, 1
      %s20 = ssub.s32 %s14, 2
      %s27 = sadd.s32 1, %s22
      %p28 = scmp.ge.s32.totalorder %s27, 2
      %s29 = scalar_select %p28, 0, %s27
      %s30 = sadd.s32 1, %s21
      %s31 = scalar_select %p28, %s30, %s21
      %p32 = scmp.ge.s32.totalorder %s31, 2
      %s33 = scalar_select %p32, 0, %s31
      %s34 = ssub.s32 %s21, %s33
      %s35 = ssub.s32 %s22, %s29
      %s36 = sor.u32 %s34, %s35
      %p37 = scmp.eq.s32.totalorder %s36, 0
      %s39 = sadd.s32 %s38, 1
      %s40 = scalar_select %p37, %s38, %s39
      %p43 = pneg %p37
      %p44 = scmp.eq.s32.totalorder %s14, 3
      %p45 = por %p43, %p44
      %p46 = scmp.ne.s32.totalorder %s38, %s41
      %p47 = scmp.eq.s32.totalorder %s14, 0
      %p48 = por %p46, %p47
      %p49 = scmp.ne.s32.totalorder %s38, %s41
      %p50 = scmp.eq.s32.totalorder %s19, 3
      %p51 = por %p49, %p50
      %p52 = scmp.ne.s32.totalorder %s41, %s42
      %p53 = scmp.eq.s32.totalorder %s19, 0
      %p54 = por %p52, %p53
      %p55 = scmp.ne.s32.totalorder %s41, %s42
      %p56 = scmp.eq.s32.totalorder %s20, 3
      %p57 = por %p55, %p56
      %p59 = scmp.ne.s32.totalorder %s42, %s58
      %p60 = scmp.eq.s32.totalorder %s20, 0
      %p61 = por %p59, %p60
      %s62 = smul.u32 %s22, 8
      %s63 = ssub.s32 %s62, 1
      %p64 = scmp.gt.s32.totalorder %s63, 0
      %s65 = scalar_select %p64, %s63, 0
      %s66 = smul.u32 %s29, 8
      %s67 = ssub.s32 %s66, 1
      %p68 = scmp.gt.s32.totalorder %s67, 0
      %s69 = scalar_select %p68, %s67, 0
      %s70 = ssub.s32 %s21, %s33
      %s71 = ssub.s32 %s65, %s69
      %s72 = sor.u32 %s70, %s71
      %p73 = scmp.eq.s32.totalorder %s72, 0
      %s75 = sadd.s32 %s74, 1
      %s76 = scalar_select %p73, %s74, %s75
      %p79 = pneg %p73
      %p80 = scmp.eq.s32.totalorder %s14, 3
      %p81 = por %p79, %p80
      %p82 = scmp.ne.s32.totalorder %s74, %s77
      %p83 = scmp.eq.s32.totalorder %s14, 0
      %p84 = por %p82, %p83
      %p85 = scmp.ne.s32.totalorder %s74, %s77
      %p86 = scmp.eq.s32.totalorder %s19, 3
      %p87 = por %p85, %p86
      %p88 = scmp.ne.s32.totalorder %s77, %s78
      %p89 = scmp.eq.s32.totalorder %s19, 0
      %p90 = por %p88, %p89
      %p91 = scmp.ne.s32.totalorder %s77, %s78
      %p92 = scmp.eq.s32.totalorder %s20, 3
      %p93 = por %p91, %p92
      %p95 = scmp.ne.s32.totalorder %s78, %s94
      %p96 = scmp.eq.s32.totalorder %s20, 0
      %p97 = por %p95, %p96
      %s98 = smul.u32 %s22, 8
      %s99 = sadd.s32 %s98, 8
      %p100 = scmp.lt.s32.totalorder %s99, 15
      %s101 = scalar_select %p100, %s99, 15
      %s102 = smul.u32 %s29, 8
      %s103 = sadd.s32 %s102, 8
      %p104 = scmp.lt.s32.totalorder %s103, 15
      %s105 = scalar_select %p104, %s103, 15
      %s106 = ssub.s32 %s21, %s33
      %s107 = ssub.s32 %s101, %s105
      %s108 = sor.u32 %s106, %s107
      %p109 = scmp.eq.s32.totalorder %s108, 0
      %s111 = sadd.s32 %s110, 1
      %s112 = scalar_select %p109, %s110, %s111
      %p115 = pneg %p109
      %p116 = scmp.eq.s32.totalorder %s14, 3
      %p117 = por %p115, %p116
      %p118 = scmp.ne.s32.totalorder %s110, %s113
      %p119 = scmp.eq.s32.totalorder %s14, 0
      %p120 = por %p118, %p119
      %p121 = scmp.ne.s32.totalorder %s110, %s113
      %p122 = scmp.eq.s32.totalorder %s19, 3
      %p123 = por %p121, %p122
      %p124 = scmp.ne.s32.totalorder %s113, %s114
      %p125 = scmp.eq.s32.totalorder %s19, 0
      %p126 = por %p124, %p125
      %p127 = scmp.ne.s32.totalorder %s113, %s114
      %p128 = scmp.eq.s32.totalorder %s20, 3
      %p129 = por %p127, %p128
      %p131 = scmp.ne.s32.totalorder %s114, %s130
      %p132 = scmp.eq.s32.totalorder %s20, 0
      %p133 = por %p131, %p132
      %s135 = sadd.s32 %s134, 1
      %p138 = scmp.eq.s32.totalorder %s14, 3
      %p139 = scmp.ne.s32.totalorder %s134, %s136
      %p140 = scmp.eq.s32.totalorder %s14, 0
      %p141 = por %p139, %p140
      %p142 = scmp.ne.s32.totalorder %s134, %s136
      %p143 = scmp.eq.s32.totalorder %s19, 3
      %p144 = por %p142, %p143
      %p145 = scmp.ne.s32.totalorder %s136, %s137
      %p146 = scmp.eq.s32.totalorder %s19, 0
      %p147 = por %p145, %p146
      %p148 = scmp.ne.s32.totalorder %s136, %s137
      %p149 = scmp.eq.s32.totalorder %s20, 3
      %p150 = por %p148, %p149
      %p152 = scmp.ne.s32.totalorder %s137, %s151
      %p153 = scmp.eq.s32.totalorder %s20, 0
      %p154 = por %p152, %p153
      %s156 = sadd.s32 %s155, 1
      %p159 = scmp.eq.s32.totalorder %s14, 3
      %p160 = scmp.ne.s32.totalorder %s155, %s157
      %p161 = scmp.eq.s32.totalorder %s14, 0
      %p162 = por %p160, %p161
      %p163 = scmp.ne.s32.totalorder %s155, %s157
      %p164 = scmp.eq.s32.totalorder %s19, 3
      %p165 = por %p163, %p164
      %p166 = scmp.ne.s32.totalorder %s157, %s158
      %p167 = scmp.eq.s32.totalorder %s19, 0
      %p168 = por %p166, %p167
      %p169 = scmp.ne.s32.totalorder %s157, %s158
      %p170 = scmp.eq.s32.totalorder %s20, 3
      %p171 = por %p169, %p170
      %p173 = scmp.ne.s32.totalorder %s158, %s172
      %p174 = scmp.eq.s32.totalorder %s20, 0
      %p175 = por %p173, %p174
      %s176 = ssub.s32 %s21, %s33
      %s177 = ssub.s32 %s22, %s29
      %s178 = sor.u32 %s176, %s177
      %p179 = scmp.eq.s32.totalorder %s178, 0
      %s181 = sadd.s32 %s180, 1
      %s182 = scalar_select %p179, %s180, %s181
      %p185 = pneg %p179
      %p186 = scmp.eq.s32.totalorder %s14, 3
      %p187 = por %p185, %p186
      %p188 = scmp.ne.s32.totalorder %s180, %s183
      %p189 = scmp.eq.s32.totalorder %s14, 0
      %p190 = por %p188, %p189
      %p191 = scmp.ne.s32.totalorder %s180, %s183
      %p192 = scmp.eq.s32.totalorder %s19, 3
      %p193 = por %p191, %p192
      %p194 = scmp.ne.s32.totalorder %s183, %s184
      %p195 = scmp.eq.s32.totalorder %s19, 0
      %p196 = por %p194, %p195
      %p197 = scmp.ne.s32.totalorder %s183, %s184
      %p198 = scmp.eq.s32.totalorder %s20, 3
      %p199 = por %p197, %p198
      %p201 = scmp.ne.s32.totalorder %s184, %s200
      %p202 = scmp.eq.s32.totalorder %s20, 0
      %p203 = por %p201, %p202
      %p204 = scmp.le.s32.totalorder 1, %s14
      %p205 = scmp.lt.s32.totalorder %s14, 5
      %p206 = pnand %p204, %p205
      %p207 = pneg %p206
      // Predicated region
      $region9: #{tpu_custom_call.1} parent=5 // pred_check
        _
      $region10: #{tpu_custom_call.1} parent=5 // pred_check_branch
        %209 = sbr.rel (%p206) target = $region12
      $region11: #{tpu_custom_call.1} parent=5 // pred_region
        %s210 = ssub.s32 %s14, 1
        // Predicated region
        $region13: #{tpu_custom_call.1} parent=11 // pred_check
          %p211 = pneg %p147
        $region14: #{tpu_custom_call.1} parent=11 // pred_check_branch
          %213 = sbr.rel (%p211) target = $region16
        $region15: #{tpu_custom_call.1} parent=11 // pred_region
          _
        $region16: #{tpu_custom_call.1} parent=11 // pred_fallthru
          _
        // Predicated region
        $region17: #{tpu_custom_call.1} parent=11 // pred_check
          %p214 = pneg %p168
        $region18: #{tpu_custom_call.1} parent=11 // pred_check_branch
          %216 = sbr.rel (%p214) target = $region20
        $region19: #{tpu_custom_call.1} parent=11 // pred_region
          _
        $region20: #{tpu_custom_call.1} parent=11 // pred_fallthru
          _
      $region12: #{tpu_custom_call.1} parent=5 // pred_fallthru
        _
      %p217 = scmp.lt.s32.totalorder %s14, 4
      // Predicated region
      $region21: #{tpu_custom_call.1} parent=5 // pred_check
        %p218 = pneg %p217
      $region22: #{tpu_custom_call.1} parent=5 // pred_check_branch
        %220 = sbr.rel (%p218) target = $region24
      $region23: #{tpu_custom_call.1} parent=5 // pred_region
        // Predicated region
        $region25: #{tpu_custom_call.1} parent=23 // pred_check
          %p221 = pneg %p48
        $region26: #{tpu_custom_call.1} parent=23 // pred_check_branch
          %223 = sbr.rel (%p221) target = $region28
        $region27: #{tpu_custom_call.1} parent=23 // pred_region
          %s224 = smul.u32 8, %s22
          %p225 = scmp.lt.s32.totalorder %s21, 1
          %s226 = scalar_select %p225, %s21, 1
          %p227 = scmp.lt.s32.totalorder %s224, 15
          %s228 = scalar_select %p227, %s224, 15
          %s229 = smul.addr %s228, 2
          %s230 = smul.addr %s226, 32
          %s231 = sadd.s32 %s229, %s230
          %s232 = smul.addr %s231, 4
          %s233 = scalar_lea.vmem %s0, %s232
          %s234 = smul.u32 8, %s22
        $region28: #{tpu_custom_call.1} parent=23 // pred_fallthru
          _
        // Predicated region
        $region29: #{tpu_custom_call.1} parent=23 // pred_check
          %p235 = pneg %p84
        $region30: #{tpu_custom_call.1} parent=23 // pred_check_branch
          %237 = sbr.rel (%p235) target = $region32
        $region31: #{tpu_custom_call.1} parent=23 // pred_region
          %s238 = smul.u32 %s22, 8
          %s239 = ssub.s32 %s238, 1
          %p240 = scmp.gt.s32.totalorder %s239, 0
          %s241 = scalar_select %p240, %s239, 0
          %p242 = scmp.lt.s32.totalorder %s21, 1
          %s243 = scalar_select %p242, %s21, 1
          %p244 = scmp.lt.s32.totalorder %s241, 15
          %s245 = scalar_select %p244, %s241, 15
          %s246 = smul.addr %s245, 2
          %s247 = smul.addr %s243, 32
          %s248 = sadd.s32 %s246, %s247
          %s249 = smul.addr %s248, 4
          %s250 = scalar_lea.vmem %s1, %s249
          %s251 = smul.u32 %s22, 8
          %s252 = ssub.s32 %s251, 1
          %p253 = scmp.gt.s32.totalorder %s252, 0
          %s254 = scalar_select %p253, %s252, 0
        $region32: #{tpu_custom_call.1} parent=23 // pred_fallthru
          _
        // Predicated region
        $region33: #{tpu_custom_call.1} parent=23 // pred_check
          %p255 = pneg %p120
        $region34: #{tpu_custom_call.1} parent=23 // pred_check_branch
          %257 = sbr.rel (%p255) target = $region36
        $region35: #{tpu_custom_call.1} parent=23 // pred_region
          %s258 = smul.u32 %s22, 8
          %s259 = sadd.s32 %s258, 8
          %p260 = scmp.lt.s32.totalorder %s259, 15
          %s261 = scalar_select %p260, %s259, 15
          %p262 = scmp.lt.s32.totalorder %s21, 1
          %s263 = scalar_select %p262, %s21, 1
          %p264 = scmp.lt.s32.totalorder %s261, 15
          %s265 = scalar_select %p264, %s261, 15
          %s266 = smul.addr %s265, 2
          %s267 = smul.addr %s263, 32
          %s268 = sadd.s32 %s266, %s267
          %s269 = smul.addr %s268, 4
          %s270 = scalar_lea.vmem %s2, %s269
          %s271 = smul.u32 %s22, 8
          %s272 = sadd.s32 %s271, 8
          %p273 = scmp.lt.s32.totalorder %s272, 15
          %s274 = scalar_select %p273, %s272, 15
        $region36: #{tpu_custom_call.1} parent=23 // pred_fallthru
          _
      $region24: #{tpu_custom_call.1} parent=5 // pred_fallthru
        _
      %p275 = scmp.le.s32.totalorder 1, %s14
      %p276 = scmp.lt.s32.totalorder %s14, 5
      %p277 = pnand %p275, %p276
      %p278 = pneg %p277
      // Predicated region
      $region37: #{tpu_custom_call.1} parent=5 // pred_check
        _
      $region38: #{tpu_custom_call.1} parent=5 // pred_check_branch
        %280 = sbr.rel (%p277) target = $region40
      $region39: #{tpu_custom_call.1} parent=5 // pred_region
        %s281 = ssub.s32 %s14, 1
        %s282 = smul.u32 8, %s24
        %p283 = scmp.lt.s32.totalorder %s23, 1
        %s284 = scalar_select %p283, %s23, 1
        %p285 = scmp.lt.s32.totalorder %s282, 15
        %s286 = scalar_select %p285, %s282, 15
        %s287 = smul.addr %s286, 2
        %s288 = smul.addr %s284, 32
        %s289 = sadd.s32 %s287, %s288
        %s290 = smul.addr %s289, 4
        %s291 = scalar_lea.vmem %s0, %s290
        %p292 = pneg %p54
        %p293 = pneg %p51
        %s294 = smul.u32 %s24, 8
        %s295 = ssub.s32 %s294, 1
        %p296 = scmp.gt.s32.totalorder %s295, 0
        %s297 = scalar_select %p296, %s295, 0
        %p298 = scmp.lt.s32.totalorder %s23, 1
        %s299 = scalar_select %p298, %s23, 1
        %p300 = scmp.lt.s32.totalorder %s297, 15
        %s301 = scalar_select %p300, %s297, 15
        %s302 = smul.addr %s301, 2
        %s303 = smul.addr %s299, 32
        %s304 = sadd.s32 %s302, %s303
        %s305 = smul.addr %s304, 4
        %s306 = scalar_lea.vmem %s1, %s305
        %p307 = pneg %p90
        %p308 = pneg %p87
        %s309 = smul.u32 %s24, 8
        %s310 = sadd.s32 %s309, 8
        %p311 = scmp.lt.s32.totalorder %s310, 15
        %s312 = scalar_select %p311, %s310, 15
        %p313 = scmp.lt.s32.totalorder %s23, 1
        %s314 = scalar_select %p313, %s23, 1
        %p315 = scmp.lt.s32.totalorder %s312, 15
        %s316 = scalar_select %p315, %s312, 15
        %s317 = smul.addr %s316, 2
        %s318 = smul.addr %s314, 32
        %s319 = sadd.s32 %s317, %s318
        %s320 = smul.addr %s319, 4
        %s321 = scalar_lea.vmem %s2, %s320
        %p322 = pneg %p126
        %p323 = pneg %p123
        %p324 = pneg %p147
        %p325 = pneg %p144
        %p326 = pneg %p168
        %p327 = pneg %p165
        %p328 = pneg %p196
        %p329 = pneg %p193
        %s330 = sand.u32 %s183, 1
        %s331 = scalar_lea.sflag [#allocation4], %s330
        %s332 = sand.u32 %s183, 1
        %s333 = smul.addr %s332, 64
        %s334 = scalar_lea.vmem [#allocation3], %s333
        %s335 = smul.u32 8, %s24
        %p336 = scmp.lt.s32.totalorder %s23, 1
        %s337 = scalar_select %p336, %s23, 1
        %p338 = scmp.lt.s32.totalorder %s335, 15
        %s339 = scalar_select %p338, %s335, 15
        %s340 = smul.addr %s339, 2
        %s341 = smul.addr %s337, 32
        %s342 = sadd.s32 %s340, %s341
        %s343 = smul.addr %s342, 4
        %s344 = scalar_lea.vmem %s0, %s343
        %s345 = smul.u32 8, %s24
        %s346 = smul.u32 %s24, 8
        %s347 = ssub.s32 %s346, 1
        %p348 = scmp.gt.s32.totalorder %s347, 0
        %s349 = scalar_select %p348, %s347, 0
        %p350 = scmp.lt.s32.totalorder %s23, 1
        %s351 = scalar_select %p350, %s23, 1
        %p352 = scmp.lt.s32.totalorder %s349, 15
        %s353 = scalar_select %p352, %s349, 15
        %s354 = smul.addr %s353, 2
        %s355 = smul.addr %s351, 32
        %s356 = sadd.s32 %s354, %s355
        %s357 = smul.addr %s356, 4
        %s358 = scalar_lea.vmem %s1, %s357
        %s359 = smul.u32 %s24, 8
        %s360 = ssub.s32 %s359, 1
        %p361 = scmp.gt.s32.totalorder %s360, 0
        %s362 = scalar_select %p361, %s360, 0
        %s363 = smul.u32 %s24, 8
        %s364 = sadd.s32 %s363, 8
        %p365 = scmp.lt.s32.totalorder %s364, 15
        %s366 = scalar_select %p365, %s364, 15
        %p367 = scmp.lt.s32.totalorder %s23, 1
        %s368 = scalar_select %p367, %s23, 1
        %p369 = scmp.lt.s32.totalorder %s366, 15
        %s370 = scalar_select %p369, %s366, 15
        %s371 = smul.addr %s370, 2
        %s372 = smul.addr %s368, 32
        %s373 = sadd.s32 %s371, %s372
        %s374 = smul.addr %s373, 4
        %s375 = scalar_lea.vmem %s2, %s374
        %s376 = smul.u32 %s24, 8
        %s377 = sadd.s32 %s376, 8
        %p378 = scmp.lt.s32.totalorder %s377, 15
        %s379 = scalar_select %p378, %s377, 15
        %s380 = smul.u32 8, %s24
        %v382 = vld [vmem:[%s344] sm:$0xf]
        %v383 = vld [vmem:[%s344 + $0x4] sm:$0xf]
        %v384 = vld [vmem:[%s344 + $0x8] sm:$0xf]
        %v385 = vld [vmem:[%s344 + $0xc] sm:$0xf]
        %v386 = vld [vmem:[%s344 + $0x10] sm:$0xf]
        %v387 = vld [vmem:[%s344 + $0x14] sm:$0xf]
        %v388 = vld [vmem:[%s344 + $0x18] sm:$0xf]
        %v389 = vld [vmem:[%s344 + $0x1c] sm:$0xf]
        %v390 = vld [vmem:[%s344 + $0x20] sm:$0xf]
        %v391 = vld [vmem:[%s344 + $0x24] sm:$0xf]
        %v392 = vld [vmem:[%s344 + $0x28] sm:$0xf]
        %v393 = vld [vmem:[%s344 + $0x2c] sm:$0xf]
        %v394 = vld [vmem:[%s344 + $0x30] sm:$0xf]
        %v395 = vld [vmem:[%s344 + $0x34] sm:$0xf]
        %v396 = vld [vmem:[%s344 + $0x38] sm:$0xf]
        %v397 = vld [vmem:[%s344 + $0x3c] sm:$0xf]
        %s398 = scalar_lea.vmem [#allocation2], 8
        %vm399 = vcmask 27648
        %400 = vst.msk [vmem:[%s398] sm:$0xf] %vm399, %v382
        %401 = vst.msk [vmem:[%s398 + $0x4] sm:$0xf] %vm399, %v383
        %402 = vst.msk [vmem:[%s398 + $0x8] sm:$0xf] %vm399, %v384
        %403 = vst.msk [vmem:[%s398 + $0xc] sm:$0xf] %vm399, %v385
        %404 = vst.msk [vmem:[%s398 + $0x10] sm:$0xf] %vm399, %v386
        %405 = vst.msk [vmem:[%s398 + $0x14] sm:$0xf] %vm399, %v387
        %406 = vst.msk [vmem:[%s398 + $0x18] sm:$0xf] %vm399, %v388
        %407 = vst.msk [vmem:[%s398 + $0x1c] sm:$0xf] %vm399, %v389
        %408 = vst.msk [vmem:[%s398 + $0x20] sm:$0xf] %vm399, %v390
        %409 = vst.msk [vmem:[%s398 + $0x24] sm:$0xf] %vm399, %v391
        %410 = vst.msk [vmem:[%s398 + $0x28] sm:$0xf] %vm399, %v392
        %411 = vst.msk [vmem:[%s398 + $0x2c] sm:$0xf] %vm399, %v393
        %412 = vst.msk [vmem:[%s398 + $0x30] sm:$0xf] %vm399, %v394
        %413 = vst.msk [vmem:[%s398 + $0x34] sm:$0xf] %vm399, %v395
        %414 = vst.msk [vmem:[%s398 + $0x38] sm:$0xf] %vm399, %v396
        %415 = vst.msk [vmem:[%s398 + $0x3c] sm:$0xf] %vm399, %v397
        %p416 = scmp.gt.s32.totalorder %s24, 0
        %v417 = vld [vmem:[%s358] sm:$0xf]
        %v418 = vld [vmem:[%s358 + $0x4] sm:$0xf]
        %s419 = scalar_select %p416, 1, 0
        %v420 = vstv %s419
        %vm421 = vcmp.eq.s32.totalorder %v420, 1
        %v422 = vsel %vm421, %v417, 0
        %v423 = vsel %vm421, %v418, 0
        %424 = vst.msk [vmem:[#allocation2] sm:$0xf] %vm399, %v422
        %425 = vst.msk [vmem:[#allocation2 + $0x4] sm:$0xf] %vm399, %v423
        %p426 = scmp.lt.s32.totalorder %s24, 1
        %v427 = vld [vmem:[%s375] sm:$0xf]
        %v428 = vld [vmem:[%s375 + $0x4] sm:$0xf]
        %s429 = scalar_select %p426, 1, 0
        %v430 = vstv %s429
        %vm431 = vcmp.eq.s32.totalorder %v430, 1
        %v432 = vsel %vm431, %v427, 0
        %v433 = vsel %vm431, %v428, 0
        %s434 = scalar_lea.vmem [#allocation2], 72
        %435 = vst.msk [vmem:[%s434] sm:$0xf] %vm399, %v432
        %436 = vst.msk [vmem:[%s434 + $0x4] sm:$0xf] %vm399, %v433
        %v437 = vld [vmem:[#allocation2] sm:$0xf]
        %v438 = vld [vmem:[#allocation2 + $0x4] sm:$0xf]
        %v439 = vld [vmem:[#allocation2 + $0x8] sm:$0xf]
        %v440 = vld [vmem:[#allocation2 + $0xc] sm:$0xf]
        %v441 = vld [vmem:[#allocation2 + $0x10] sm:$0xf]
        %v442 = vld [vmem:[#allocation2 + $0x14] sm:$0xf]
        %v443 = vld [vmem:[#allocation2 + $0x18] sm:$0xf]
        %v444 = vld [vmem:[#allocation2 + $0x1c] sm:$0xf]
        %v445 = vld [vmem:[#allocation2 + $0x20] sm:$0xf]
        %v446 = vld [vmem:[#allocation2 + $0x24] sm:$0xf]
        %v447 = vld [vmem:[#allocation2 + $0x28] sm:$0xf]
        %v448 = vld [vmem:[#allocation2 + $0x2c] sm:$0xf]
        %v449 = vld [vmem:[#allocation2 + $0x30] sm:$0xf]
        %v450 = vld [vmem:[#allocation2 + $0x34] sm:$0xf]
        %v451 = vld [vmem:[#allocation2 + $0x38] sm:$0xf]
        %v452 = vld [vmem:[#allocation2 + $0x3c] sm:$0xf]
        %v453 = vld [vmem:[#allocation2 + $0x40] sm:$0xf]
        %v454 = vld [vmem:[#allocation2 + $0x44] sm:$0xf]
        %v455 = vld [vmem:[#allocation2 + $0x48] sm:$0xf]
        %v456 = vld [vmem:[#allocation2 + $0x4c] sm:$0xf]
        %v477 = vunpack.c.l.b16 %v437
        %v478 = vunpack.c.l.b16 %v438
        %v479 = vunpack.c.l.b16 %v439
        %v480 = vunpack.c.l.b16 %v440
        %v481 = vunpack.c.l.b16 %v441
        %v482 = vunpack.c.l.b16 %v442
        %v483 = vunpack.c.l.b16 %v443
        %v484 = vunpack.c.l.b16 %v444
        %v485 = vunpack.c.l.b16 %v445
        %v486 = vunpack.c.l.b16 %v446
        %v487 = vunpack.c.l.b16 %v447
        %v488 = vunpack.c.l.b16 %v448
        %v489 = vunpack.c.l.b16 %v449
        %v490 = vunpack.c.l.b16 %v450
        %v491 = vunpack.c.l.b16 %v451
        %v492 = vunpack.c.l.b16 %v452
        %v493 = vunpack.c.l.b16 %v453
        %v494 = vunpack.c.l.b16 %v454
        %v495 = vunpack.c.l.b16 %v455
        %v496 = vunpack.c.l.b16 %v456
        %v497 = vpack.c.b16 %v478, %v477
        %v498 = vpack.c.b16 %v480, %v479
        %v499 = vpack.c.b16 %v482, %v481
        %v500 = vpack.c.b16 %v484, %v483
        %v501 = vpack.c.b16 %v486, %v485
        %v502 = vpack.c.b16 %v488, %v487
        %v503 = vpack.c.b16 %v490, %v489
        %v504 = vpack.c.b16 %v492, %v491
        %v505 = vpack.c.b16 %v494, %v493
        %v506 = vpack.c.b16 %v496, %v495
        %v508 = vshrl.u32 %v497, 16
        %v510 = vrot.slane %v508, 7
        %v511 = vshll.u32 %v497, 16
        %v513 = vor.u32 %v510, %v511
        %v515 = vshrl.u32 %v498, 16
        %v517 = vrot.slane %v515, 7
        %v518 = vshll.u32 %v498, 16
        %v520 = vor.u32 %v517, %v518
        %v522 = vshrl.u32 %v499, 16
        %v524 = vrot.slane %v522, 7
        %v525 = vshll.u32 %v499, 16
        %v527 = vor.u32 %v524, %v525
        %v529 = vshrl.u32 %v500, 16
        %v531 = vrot.slane %v529, 7
        %v532 = vshll.u32 %v500, 16
        %v534 = vor.u32 %v531, %v532
        %v536 = vshrl.u32 %v501, 16
        %v538 = vrot.slane %v536, 7
        %v539 = vshll.u32 %v501, 16
        %v541 = vor.u32 %v538, %v539
        %v543 = vshrl.u32 %v502, 16
        %v545 = vrot.slane %v543, 7
        %v546 = vshll.u32 %v502, 16
        %v548 = vor.u32 %v545, %v546
        %v550 = vshrl.u32 %v503, 16
        %v552 = vrot.slane %v550, 7
        %v553 = vshll.u32 %v503, 16
        %v555 = vor.u32 %v552, %v553
        %v557 = vshrl.u32 %v504, 16
        %v559 = vrot.slane %v557, 7
        %v560 = vshll.u32 %v504, 16
        %v562 = vor.u32 %v559, %v560
        %v564 = vshrl.u32 %v505, 16
        %v566 = vrot.slane %v564, 7
        %v567 = vshll.u32 %v505, 16
        %v569 = vor.u32 %v566, %v567
        %v571 = vshrl.u32 %v506, 16
        %v573 = vrot.slane %v571, 7
        %v574 = vshll.u32 %v506, 16
        %v576 = vor.u32 %v573, %v574
        %vm587 = vcmask 1040384
        %vm588 = vsmask.f32 256
        %vm589 = vmand %vm587, %vm588
        %v590 = vsel %vm589, 0, %v513
        %v591 = vsel %vm589, 0, %v520
        %v592 = vsel %vm589, 0, %v527
        %v593 = vsel %vm589, 0, %v534
        %v594 = vsel %vm589, 0, %v541
        %v595 = vsel %vm589, 0, %v548
        %v596 = vsel %vm589, 0, %v555
        %v597 = vsel %vm589, 0, %v562
        %v598 = vsel %vm589, 0, %v569
        %v599 = vsel %vm589, 0, %v576
        %v600 = vrot.slane %v511, 1
        %v601 = vor.u32 %v508, %v600
        %v602 = vrot.slane %v518, 1
        %v603 = vor.u32 %v515, %v602
        %v604 = vrot.slane %v525, 1
        %v605 = vor.u32 %v522, %v604
        %v606 = vrot.slane %v532, 1
        %v607 = vor.u32 %v529, %v606
        %v608 = vrot.slane %v539, 1
        %v609 = vor.u32 %v536, %v608
        %v610 = vrot.slane %v546, 1
        %v611 = vor.u32 %v543, %v610
        %v612 = vrot.slane %v553, 1
        %v613 = vor.u32 %v550, %v612
        %v614 = vrot.slane %v560, 1
        %v615 = vor.u32 %v557, %v614
        %v616 = vrot.slane %v567, 1
        %v617 = vor.u32 %v564, %v616
        %v618 = vrot.slane %v574, 1
        %v619 = vor.u32 %v571, %v618
        %vm630 = vcmask 1047552
        %vm631 = vsmask.f32 7424
        %vm632 = vmand %vm630, %vm631
        %v633 = vsel %vm632, %v601, 0
        %v634 = vsel %vm632, %v603, 0
        %v635 = vsel %vm632, %v605, 0
        %v636 = vsel %vm632, %v607, 0
        %v637 = vsel %vm632, %v609, 0
        %v638 = vsel %vm632, %v611, 0
        %v639 = vsel %vm632, %v613, 0
        %v640 = vsel %vm632, %v615, 0
        %v641 = vsel %vm632, %v617, 0
        %v642 = vsel %vm632, %v619, 0
        %v643 = vld [vmem:[%s3] sm:$0x3]
        %s644 = scalar_lea.vmem %s3, 2
        %v645 = vld [vmem:[%s644] sm:$0x3]
        %vm646 = vcmask 31744
        %v647 = vsel %vm646, %v497, 0
        %v649 = vsel %vm646, %v498, 0
        %v651 = vsel %vm646, %v499, 0
        %v653 = vsel %vm646, %v500, 0
        %v655 = vsel %vm646, %v501, 0
        %v657 = vsel %vm646, %v502, 0
        %v659 = vsel %vm646, %v503, 0
        %v661 = vsel %vm646, %v504, 0
        %vm663 = vcmask 1041408
        %v665 = vsel %vm663, %v645, 0
        %667 = vmatprep.subr.bf16.mxu0 0
        %668 = vmatpush1.bf16.msra.mxu0 0
        %669 = vmatprep.subr.bf16.mxu0 0
        %670 = vmatpush1.bf16.msra.mxu0 0
        %671 = vmatprep.subr.bf16.mxu0 0
        %672 = vmatpush1.bf16.msra.mxu0 0
        %673 = vmatprep.subr.bf16.mxu0 0
        %674 = vmatpush1.bf16.msra.mxu0 0
        %675 = vmatprep.subr.bf16.mxu0 0
        %676 = vmatpush1.bf16.msra.mxu0 0
        %677 = vmatprep.subr.bf16.mxu0 0
        %678 = vmatpush1.bf16.msra.mxu0 0
        %679 = vmatprep.subr.bf16.mxu0 0
        %680 = vmatpush1.bf16.msra.mxu0 0
        %681 = vmatprep.subr.bf16.mxu0 0
        %682 = vmatpush1.bf16.msra.mxu0 %v665
        %683 = vmatprep.subr.bf16.mxu0 0
        %684 = vmatpush2.bf16.msra.mxu0 0
        %685 = vmatprep.subr.bf16.mxu0 0
        %686 = vmatpush2.bf16.msra.mxu0 0
        %687 = vmatprep.subr.bf16.mxu0 0
        %688 = vmatpush2.bf16.msra.mxu0 0
        %689 = vmatprep.subr.bf16.mxu0 0
        %690 = vmatpush2.bf16.msra.mxu0 0
        %691 = vmatprep.subr.bf16.mxu0 0
        %692 = vmatpush2.bf16.msra.mxu0 0
        %693 = vmatprep.subr.bf16.mxu0 0
        %694 = vmatpush2.bf16.msra.mxu0 0
        %695 = vmatprep.subr.bf16.mxu0 0
        %696 = vmatpush2.bf16.msra.mxu0 0
        %697 = vmatprep.subr.bf16.mxu0 0
        %698 = vmatpush2.bf16.msra.mxu0 0
        %699 = vmatprep.mubr.bf16.mxu0 0
        %700 = vmatmul.mubr.bf16.gmra.mxu0 %v647
        %v701 = vpop.f32.mrf.mxu0
        %v702 = vadd.f32 0.0, %v701
        %v703 = vpop.f32.mrf.mxu0
        %v704 = vpop.f32.mrf.mxu0
        %v705 = vadd.f32 0.0, %v704
        %v706 = vpop.f32.mrf.mxu0
        %707 = vmatprep.mubr.bf16.mxu0 0
        %708 = vmatmul.mubr.bf16.gmra.mxu0 %v649
        %v709 = vpop.f32.mrf.mxu0
        %v710 = vadd.f32 0.0, %v709
        %v711 = vpop.f32.mrf.mxu0
        %v712 = vpop.f32.mrf.mxu0
        %v713 = vadd.f32 0.0, %v712
        %v714 = vpop.f32.mrf.mxu0
        %715 = vmatprep.mubr.bf16.mxu0 0
        %716 = vmatmul.mubr.bf16.gmra.mxu0 %v651
        %v717 = vpop.f32.mrf.mxu0
        %v718 = vadd.f32 0.0, %v717
        %v719 = vpop.f32.mrf.mxu0
        %v720 = vpop.f32.mrf.mxu0
        %v721 = vadd.f32 0.0, %v720
        %v722 = vpop.f32.mrf.mxu0
        %723 = vmatprep.mubr.bf16.mxu0 0
        %724 = vmatmul.mubr.bf16.gmra.mxu0 %v653
        %v725 = vpop.f32.mrf.mxu0
        %v726 = vadd.f32 0.0, %v725
        %v727 = vpop.f32.mrf.mxu0
        %v728 = vpop.f32.mrf.mxu0
        %v729 = vadd.f32 0.0, %v728
        %v730 = vpop.f32.mrf.mxu0
        %731 = vmatprep.mubr.bf16.mxu0 0
        %732 = vmatmul.mubr.bf16.gmra.mxu0 %v655
        %v733 = vpop.f32.mrf.mxu0
        %v734 = vadd.f32 0.0, %v733
        %v735 = vpop.f32.mrf.mxu0
        %v736 = vpop.f32.mrf.mxu0
        %v737 = vadd.f32 0.0, %v736
        %v738 = vpop.f32.mrf.mxu0
        %739 = vmatprep.mubr.bf16.mxu0 0
        %740 = vmatmul.mubr.bf16.gmra.mxu0 %v657
        %v741 = vpop.f32.mrf.mxu0
        %v742 = vadd.f32 0.0, %v741
        %v743 = vpop.f32.mrf.mxu0
        %v744 = vpop.f32.mrf.mxu0
        %v745 = vadd.f32 0.0, %v744
        %v746 = vpop.f32.mrf.mxu0
        %747 = vmatprep.mubr.bf16.mxu0 0
        %748 = vmatmul.mubr.bf16.gmra.mxu0 %v659
        %v749 = vpop.f32.mrf.mxu0
        %v750 = vadd.f32 0.0, %v749
        %v751 = vpop.f32.mrf.mxu0
        %v752 = vpop.f32.mrf.mxu0
        %v753 = vadd.f32 0.0, %v752
        %v754 = vpop.f32.mrf.mxu0
        %755 = vmatprep.mubr.bf16.mxu0 0
        %756 = vmatmul.mubr.bf16.gmra.mxu0 %v661
        %v757 = vpop.f32.mrf.mxu0
        %v758 = vadd.f32 0.0, %v757
        %v759 = vpop.f32.mrf.mxu0
        %v760 = vpop.f32.mrf.mxu0
        %v761 = vadd.f32 0.0, %v760
        %v762 = vpop.f32.mrf.mxu0
        %763 = vdwg.mxu0
        %v765 = vsel %vm646, %v590, 0
        %v768 = vsel %vm646, %v591, 0
        %v771 = vsel %vm646, %v592, 0
        %v774 = vsel %vm646, %v593, 0
        %v777 = vsel %vm646, %v594, 0
        %v780 = vsel %vm646, %v595, 0
        %v783 = vsel %vm646, %v596, 0
        %v786 = vsel %vm646, %v597, 0
        %v789 = vsel %vm663, %v643, 0
        %791 = vmatprep.subr.bf16.mxu0 0
        %792 = vmatpush1.bf16.msra.mxu0 0
        %793 = vmatprep.subr.bf16.mxu0 0
        %794 = vmatpush1.bf16.msra.mxu0 0
        %795 = vmatprep.subr.bf16.mxu0 0
        %796 = vmatpush1.bf16.msra.mxu0 0
        %797 = vmatprep.subr.bf16.mxu0 0
        %798 = vmatpush1.bf16.msra.mxu0 0
        %799 = vmatprep.subr.bf16.mxu0 0
        %800 = vmatpush1.bf16.msra.mxu0 0
        %801 = vmatprep.subr.bf16.mxu0 0
        %802 = vmatpush1.bf16.msra.mxu0 0
        %803 = vmatprep.subr.bf16.mxu0 0
        %804 = vmatpush1.bf16.msra.mxu0 0
        %805 = vmatprep.subr.bf16.mxu0 0
        %806 = vmatpush1.bf16.msra.mxu0 %v789
        %807 = vmatprep.subr.bf16.mxu0 0
        %808 = vmatpush2.bf16.msra.mxu0 0
        %809 = vmatprep.subr.bf16.mxu0 0
        %810 = vmatpush2.bf16.msra.mxu0 0
        %811 = vmatprep.subr.bf16.mxu0 0
        %812 = vmatpush2.bf16.msra.mxu0 0
        %813 = vmatprep.subr.bf16.mxu0 0
        %814 = vmatpush2.bf16.msra.mxu0 0
        %815 = vmatprep.subr.bf16.mxu0 0
        %816 = vmatpush2.bf16.msra.mxu0 0
        %817 = vmatprep.subr.bf16.mxu0 0
        %818 = vmatpush2.bf16.msra.mxu0 0
        %819 = vmatprep.subr.bf16.mxu0 0
        %820 = vmatpush2.bf16.msra.mxu0 0
        %821 = vmatprep.subr.bf16.mxu0 0
        %822 = vmatpush2.bf16.msra.mxu0 0
        %823 = vmatprep.mubr.bf16.mxu0 0
        %824 = vmatmul.mubr.bf16.gmra.mxu0 %v765
        %v825 = vpop.f32.mrf.mxu0
        %v826 = vadd.f32 %v702, %v825
        %v827 = vpop.f32.mrf.mxu0
        %v828 = vpop.f32.mrf.mxu0
        %v829 = vadd.f32 %v705, %v828
        %v830 = vpop.f32.mrf.mxu0
        %831 = vmatprep.mubr.bf16.mxu0 0
        %832 = vmatmul.mubr.bf16.gmra.mxu0 %v768
        %v833 = vpop.f32.mrf.mxu0
        %v834 = vadd.f32 %v710, %v833
        %v835 = vpop.f32.mrf.mxu0
        %v836 = vpop.f32.mrf.mxu0
        %v837 = vadd.f32 %v713, %v836
        %v838 = vpop.f32.mrf.mxu0
        %839 = vmatprep.mubr.bf16.mxu0 0
        %840 = vmatmul.mubr.bf16.gmra.mxu0 %v771
        %v841 = vpop.f32.mrf.mxu0
        %v842 = vadd.f32 %v718, %v841
        %v843 = vpop.f32.mrf.mxu0
        %v844 = vpop.f32.mrf.mxu0
        %v845 = vadd.f32 %v721, %v844
        %v846 = vpop.f32.mrf.mxu0
        %847 = vmatprep.mubr.bf16.mxu0 0
        %848 = vmatmul.mubr.bf16.gmra.mxu0 %v774
        %v849 = vpop.f32.mrf.mxu0
        %v850 = vadd.f32 %v726, %v849
        %v851 = vpop.f32.mrf.mxu0
        %v852 = vpop.f32.mrf.mxu0
        %v853 = vadd.f32 %v729, %v852
        %v854 = vpop.f32.mrf.mxu0
        %855 = vmatprep.mubr.bf16.mxu0 0
        %856 = vmatmul.mubr.bf16.gmra.mxu0 %v777
        %v857 = vpop.f32.mrf.mxu0
        %v858 = vadd.f32 %v734, %v857
        %v859 = vpop.f32.mrf.mxu0
        %v860 = vpop.f32.mrf.mxu0
        %v861 = vadd.f32 %v737, %v860
        %v862 = vpop.f32.mrf.mxu0
        %863 = vmatprep.mubr.bf16.mxu0 0
        %864 = vmatmul.mubr.bf16.gmra.mxu0 %v780
        %v865 = vpop.f32.mrf.mxu0
        %v866 = vadd.f32 %v742, %v865
        %v867 = vpop.f32.mrf.mxu0
        %v868 = vpop.f32.mrf.mxu0
        %v869 = vadd.f32 %v745, %v868
        %v870 = vpop.f32.mrf.mxu0
        %871 = vmatprep.mubr.bf16.mxu0 0
        %872 = vmatmul.mubr.bf16.gmra.mxu0 %v783
        %v873 = vpop.f32.mrf.mxu0
        %v874 = vadd.f32 %v750, %v873
        %v875 = vpop.f32.mrf.mxu0
        %v876 = vpop.f32.mrf.mxu0
        %v877 = vadd.f32 %v753, %v876
        %v878 = vpop.f32.mrf.mxu0
        %879 = vmatprep.mubr.bf16.mxu0 0
        %880 = vmatmul.mubr.bf16.gmra.mxu0 %v786
        %v881 = vpop.f32.mrf.mxu0
        %v882 = vadd.f32 %v758, %v881
        %v883 = vpop.f32.mrf.mxu0
        %v884 = vpop.f32.mrf.mxu0
        %v885 = vadd.f32 %v761, %v884
        %v886 = vpop.f32.mrf.mxu0
        %887 = vdwg.mxu0
        %s888 = scalar_lea.vmem %s3, 4
        %v889 = vld [vmem:[%s888] sm:$0x3]
        %v891 = vsel %vm646, %v633, 0
        %v894 = vsel %vm646, %v634, 0
        %v897 = vsel %vm646, %v635, 0
        %v900 = vsel %vm646, %v636, 0
        %v903 = vsel %vm646, %v637, 0
        %v906 = vsel %vm646, %v638, 0
        %v909 = vsel %vm646, %v639, 0
        %v912 = vsel %vm646, %v640, 0
        %v915 = vsel %vm663, %v889, 0
        %917 = vmatprep.subr.bf16.mxu0 0
        %918 = vmatpush1.bf16.msra.mxu0 0
        %919 = vmatprep.subr.bf16.mxu0 0
        %920 = vmatpush1.bf16.msra.mxu0 0
        %921 = vmatprep.subr.bf16.mxu0 0
        %922 = vmatpush1.bf16.msra.mxu0 0
        %923 = vmatprep.subr.bf16.mxu0 0
        %924 = vmatpush1.bf16.msra.mxu0 0
        %925 = vmatprep.subr.bf16.mxu0 0
        %926 = vmatpush1.bf16.msra.mxu0 0
        %927 = vmatprep.subr.bf16.mxu0 0
        %928 = vmatpush1.bf16.msra.mxu0 0
        %929 = vmatprep.subr.bf16.mxu0 0
        %930 = vmatpush1.bf16.msra.mxu0 0
        %931 = vmatprep.subr.bf16.mxu0 0
        %932 = vmatpush1.bf16.msra.mxu0 %v915
        %933 = vmatprep.subr.bf16.mxu0 0
        %934 = vmatpush2.bf16.msra.mxu0 0
        %935 = vmatprep.subr.bf16.mxu0 0
        %936 = vmatpush2.bf16.msra.mxu0 0
        %937 = vmatprep.subr.bf16.mxu0 0
        %938 = vmatpush2.bf16.msra.mxu0 0
        %939 = vmatprep.subr.bf16.mxu0 0
        %940 = vmatpush2.bf16.msra.mxu0 0
        %941 = vmatprep.subr.bf16.mxu0 0
        %942 = vmatpush2.bf16.msra.mxu0 0
        %943 = vmatprep.subr.bf16.mxu0 0
        %944 = vmatpush2.bf16.msra.mxu0 0
        %945 = vmatprep.subr.bf16.mxu0 0
        %946 = vmatpush2.bf16.msra.mxu0 0
        %947 = vmatprep.subr.bf16.mxu0 0
        %948 = vmatpush2.bf16.msra.mxu0 0
        %949 = vmatprep.mubr.bf16.mxu0 0
        %950 = vmatmul.mubr.bf16.gmra.mxu0 %v891
        %v951 = vpop.f32.mrf.mxu0
        %v952 = vadd.f32 0.0, %v951
        %v953 = vpop.f32.mrf.mxu0
        %v954 = vpop.f32.mrf.mxu0
        %v955 = vadd.f32 0.0, %v954
        %v956 = vpop.f32.mrf.mxu0
        %957 = vmatprep.mubr.bf16.mxu0 0
        %958 = vmatmul.mubr.bf16.gmra.mxu0 %v894
        %v959 = vpop.f32.mrf.mxu0
        %v960 = vadd.f32 0.0, %v959
        %v961 = vpop.f32.mrf.mxu0
        %v962 = vpop.f32.mrf.mxu0
        %v963 = vadd.f32 0.0, %v962
        %v964 = vpop.f32.mrf.mxu0
        %965 = vmatprep.mubr.bf16.mxu0 0
        %966 = vmatmul.mubr.bf16.gmra.mxu0 %v897
        %v967 = vpop.f32.mrf.mxu0
        %v968 = vadd.f32 0.0, %v967
        %v969 = vpop.f32.mrf.mxu0
        %v970 = vpop.f32.mrf.mxu0
        %v971 = vadd.f32 0.0, %v970
        %v972 = vpop.f32.mrf.mxu0
        %973 = vmatprep.mubr.bf16.mxu0 0
        %974 = vmatmul.mubr.bf16.gmra.mxu0 %v900
        %v975 = vpop.f32.mrf.mxu0
        %v976 = vadd.f32 0.0, %v975
        %v977 = vpop.f32.mrf.mxu0
        %v978 = vpop.f32.mrf.mxu0
        %v979 = vadd.f32 0.0, %v978
        %v980 = vpop.f32.mrf.mxu0
        %981 = vmatprep.mubr.bf16.mxu0 0
        %982 = vmatmul.mubr.bf16.gmra.mxu0 %v903
        %v983 = vpop.f32.mrf.mxu0
        %v984 = vadd.f32 0.0, %v983
        %v985 = vpop.f32.mrf.mxu0
        %v986 = vpop.f32.mrf.mxu0
        %v987 = vadd.f32 0.0, %v986
        %v988 = vpop.f32.mrf.mxu0
        %989 = vmatprep.mubr.bf16.mxu0 0
        %990 = vmatmul.mubr.bf16.gmra.mxu0 %v906
        %v991 = vpop.f32.mrf.mxu0
        %v992 = vadd.f32 0.0, %v991
        %v993 = vpop.f32.mrf.mxu0
        %v994 = vpop.f32.mrf.mxu0
        %v995 = vadd.f32 0.0, %v994
        %v996 = vpop.f32.mrf.mxu0
        %997 = vmatprep.mubr.bf16.mxu0 0
        %998 = vmatmul.mubr.bf16.gmra.mxu0 %v909
        %v999 = vpop.f32.mrf.mxu0
        %v1000 = vadd.f32 0.0, %v999
        %v1001 = vpop.f32.mrf.mxu0
        %v1002 = vpop.f32.mrf.mxu0
        %v1003 = vadd.f32 0.0, %v1002
        %v1004 = vpop.f32.mrf.mxu0
        %1005 = vmatprep.mubr.bf16.mxu0 0
        %1006 = vmatmul.mubr.bf16.gmra.mxu0 %v912
        %v1007 = vpop.f32.mrf.mxu0
        %v1008 = vadd.f32 0.0, %v1007
        %v1009 = vpop.f32.mrf.mxu0
        %v1010 = vpop.f32.mrf.mxu0
        %v1011 = vadd.f32 0.0, %v1010
        %v1012 = vpop.f32.mrf.mxu0
        %1013 = vdwg.mxu0
        %v1014 = vadd.f32 %v826, %v952
        %v1015 = vadd.f32 %v829, %v955
        %v1016 = vadd.f32 %v834, %v960
        %v1017 = vadd.f32 %v837, %v963
        %v1018 = vadd.f32 %v842, %v968
        %v1019 = vadd.f32 %v845, %v971
        %v1020 = vadd.f32 %v850, %v976
        %v1021 = vadd.f32 %v853, %v979
        %v1022 = vadd.f32 %v858, %v984
        %v1023 = vadd.f32 %v861, %v987
        %v1024 = vadd.f32 %v866, %v992
        %v1025 = vadd.f32 %v869, %v995
        %v1026 = vadd.f32 %v874, %v1000
        %v1027 = vadd.f32 %v877, %v1003
        %v1028 = vadd.f32 %v882, %v1008
        %v1029 = vadd.f32 %v885, %v1011
        %s1030 = scalar_lea.vmem %s3, 6
        %v1031 = vld [vmem:[%s1030] sm:$0x3]
        %v1033 = vsel %vm646, %v598, 0
        %v1036 = vsel %vm663, %v1031, 0
        %1038 = vmatprep.subr.bf16.mxu0 0
        %1039 = vmatpush1.bf16.msra.mxu0 0
        %1040 = vmatprep.subr.bf16.mxu0 0
        %1041 = vmatpush1.bf16.msra.mxu0 0
        %1042 = vmatprep.subr.bf16.mxu0 0
        %1043 = vmatpush1.bf16.msra.mxu0 0
        %1044 = vmatprep.subr.bf16.mxu0 0
        %1045 = vmatpush1.bf16.msra.mxu0 0
        %1046 = vmatprep.subr.bf16.mxu0 0
        %1047 = vmatpush1.bf16.msra.mxu0 0
        %1048 = vmatprep.subr.bf16.mxu0 0
        %1049 = vmatpush1.bf16.msra.mxu0 0
        %1050 = vmatprep.subr.bf16.mxu0 0
        %1051 = vmatpush1.bf16.msra.mxu0 0
        %1052 = vmatprep.subr.bf16.mxu0 0
        %1053 = vmatpush1.bf16.msra.mxu0 %v1036
        %1054 = vmatprep.subr.bf16.mxu0 0
        %1055 = vmatpush2.bf16.msra.mxu0 0
        %1056 = vmatprep.subr.bf16.mxu0 0
        %1057 = vmatpush2.bf16.msra.mxu0 0
        %1058 = vmatprep.subr.bf16.mxu0 0
        %1059 = vmatpush2.bf16.msra.mxu0 0
        %1060 = vmatprep.subr.bf16.mxu0 0
        %1061 = vmatpush2.bf16.msra.mxu0 0
        %1062 = vmatprep.subr.bf16.mxu0 0
        %1063 = vmatpush2.bf16.msra.mxu0 0
        %1064 = vmatprep.subr.bf16.mxu0 0
        %1065 = vmatpush2.bf16.msra.mxu0 0
        %1066 = vmatprep.subr.bf16.mxu0 0
        %1067 = vmatpush2.bf16.msra.mxu0 0
        %1068 = vmatprep.subr.bf16.mxu0 0
        %1069 = vmatpush2.bf16.msra.mxu0 0
        %1070 = vmatprep.mubr.bf16.mxu0 0
        %1071 = vmatmul.mubr.bf16.gmra.mxu0 %v768
        %v1072 = vpop.f32.mrf.mxu0
        %v1073 = vadd.f32 0.0, %v1072
        %v1074 = vpop.f32.mrf.mxu0
        %v1075 = vpop.f32.mrf.mxu0
        %v1076 = vadd.f32 0.0, %v1075
        %v1077 = vpop.f32.mrf.mxu0
        %1078 = vmatprep.mubr.bf16.mxu0 0
        %1079 = vmatmul.mubr.bf16.gmra.mxu0 %v771
        %v1080 = vpop.f32.mrf.mxu0
        %v1081 = vadd.f32 0.0, %v1080
        %v1082 = vpop.f32.mrf.mxu0
        %v1083 = vpop.f32.mrf.mxu0
        %v1084 = vadd.f32 0.0, %v1083
        %v1085 = vpop.f32.mrf.mxu0
        %1086 = vmatprep.mubr.bf16.mxu0 0
        %1087 = vmatmul.mubr.bf16.gmra.mxu0 %v774
        %v1088 = vpop.f32.mrf.mxu0
        %v1089 = vadd.f32 0.0, %v1088
        %v1090 = vpop.f32.mrf.mxu0
        %v1091 = vpop.f32.mrf.mxu0
        %v1092 = vadd.f32 0.0, %v1091
        %v1093 = vpop.f32.mrf.mxu0
        %1094 = vmatprep.mubr.bf16.mxu0 0
        %1095 = vmatmul.mubr.bf16.gmra.mxu0 %v777
        %v1096 = vpop.f32.mrf.mxu0
        %v1097 = vadd.f32 0.0, %v1096
        %v1098 = vpop.f32.mrf.mxu0
        %v1099 = vpop.f32.mrf.mxu0
        %v1100 = vadd.f32 0.0, %v1099
        %v1101 = vpop.f32.mrf.mxu0
        %1102 = vmatprep.mubr.bf16.mxu0 0
        %1103 = vmatmul.mubr.bf16.gmra.mxu0 %v780
        %v1104 = vpop.f32.mrf.mxu0
        %v1105 = vadd.f32 0.0, %v1104
        %v1106 = vpop.f32.mrf.mxu0
        %v1107 = vpop.f32.mrf.mxu0
        %v1108 = vadd.f32 0.0, %v1107
        %v1109 = vpop.f32.mrf.mxu0
        %1110 = vmatprep.mubr.bf16.mxu0 0
        %1111 = vmatmul.mubr.bf16.gmra.mxu0 %v783
        %v1112 = vpop.f32.mrf.mxu0
        %v1113 = vadd.f32 0.0, %v1112
        %v1114 = vpop.f32.mrf.mxu0
        %v1115 = vpop.f32.mrf.mxu0
        %v1116 = vadd.f32 0.0, %v1115
        %v1117 = vpop.f32.mrf.mxu0
        %1118 = vmatprep.mubr.bf16.mxu0 0
        %1119 = vmatmul.mubr.bf16.gmra.mxu0 %v786
        %v1120 = vpop.f32.mrf.mxu0
        %v1121 = vadd.f32 0.0, %v1120
        %v1122 = vpop.f32.mrf.mxu0
        %v1123 = vpop.f32.mrf.mxu0
        %v1124 = vadd.f32 0.0, %v1123
        %v1125 = vpop.f32.mrf.mxu0
        %1126 = vmatprep.mubr.bf16.mxu0 0
        %1127 = vmatmul.mubr.bf16.gmra.mxu0 %v1033
        %v1128 = vpop.f32.mrf.mxu0
        %v1129 = vadd.f32 0.0, %v1128
        %v1130 = vpop.f32.mrf.mxu0
        %v1131 = vpop.f32.mrf.mxu0
        %v1132 = vadd.f32 0.0, %v1131
        %v1133 = vpop.f32.mrf.mxu0
        %1134 = vdwg.mxu0
        %v1135 = vadd.f32 %v1014, %v1073
        %v1136 = vadd.f32 %v1015, %v1076
        %v1137 = vadd.f32 %v1016, %v1081
        %v1138 = vadd.f32 %v1017, %v1084
        %v1139 = vadd.f32 %v1018, %v1089
        %v1140 = vadd.f32 %v1019, %v1092
        %v1141 = vadd.f32 %v1020, %v1097
        %v1142 = vadd.f32 %v1021, %v1100
        %v1143 = vadd.f32 %v1022, %v1105
        %v1144 = vadd.f32 %v1023, %v1108
        %v1145 = vadd.f32 %v1024, %v1113
        %v1146 = vadd.f32 %v1025, %v1116
        %v1147 = vadd.f32 %v1026, %v1121
        %v1148 = vadd.f32 %v1027, %v1124
        %v1149 = vadd.f32 %v1028, %v1129
        %v1150 = vadd.f32 %v1029, %v1132
        %s1151 = scalar_lea.vmem %s3, 8
        %v1152 = vld [vmem:[%s1151] sm:$0x3]
        %v1153 = vsel %vm646, %v505, 0
        %v1156 = vsel %vm663, %v1152, 0
        %1158 = vmatprep.subr.bf16.mxu0 0
        %1159 = vmatpush1.bf16.msra.mxu0 0
        %1160 = vmatprep.subr.bf16.mxu0 0
        %1161 = vmatpush1.bf16.msra.mxu0 0
        %1162 = vmatprep.subr.bf16.mxu0 0
        %1163 = vmatpush1.bf16.msra.mxu0 0
        %1164 = vmatprep.subr.bf16.mxu0 0
        %1165 = vmatpush1.bf16.msra.mxu0 0
        %1166 = vmatprep.subr.bf16.mxu0 0
        %1167 = vmatpush1.bf16.msra.mxu0 0
        %1168 = vmatprep.subr.bf16.mxu0 0
        %1169 = vmatpush1.bf16.msra.mxu0 0
        %1170 = vmatprep.subr.bf16.mxu0 0
        %1171 = vmatpush1.bf16.msra.mxu0 0
        %1172 = vmatprep.subr.bf16.mxu0 0
        %1173 = vmatpush1.bf16.msra.mxu0 %v1156
        %1174 = vmatprep.subr.bf16.mxu0 0
        %1175 = vmatpush2.bf16.msra.mxu0 0
        %1176 = vmatprep.subr.bf16.mxu0 0
        %1177 = vmatpush2.bf16.msra.mxu0 0
        %1178 = vmatprep.subr.bf16.mxu0 0
        %1179 = vmatpush2.bf16.msra.mxu0 0
        %1180 = vmatprep.subr.bf16.mxu0 0
        %1181 = vmatpush2.bf16.msra.mxu0 0
        %1182 = vmatprep.subr.bf16.mxu0 0
        %1183 = vmatpush2.bf16.msra.mxu0 0
        %1184 = vmatprep.subr.bf16.mxu0 0
        %1185 = vmatpush2.bf16.msra.mxu0 0
        %1186 = vmatprep.subr.bf16.mxu0 0
        %1187 = vmatpush2.bf16.msra.mxu0 0
        %1188 = vmatprep.subr.bf16.mxu0 0
        %1189 = vmatpush2.bf16.msra.mxu0 0
        %1190 = vmatprep.mubr.bf16.mxu0 0
        %1191 = vmatmul.mubr.bf16.gmra.mxu0 %v649
        %v1192 = vpop.f32.mrf.mxu0
        %v1193 = vadd.f32 0.0, %v1192
        %v1194 = vpop.f32.mrf.mxu0
        %v1195 = vpop.f32.mrf.mxu0
        %v1196 = vadd.f32 0.0, %v1195
        %v1197 = vpop.f32.mrf.mxu0
        %1198 = vmatprep.mubr.bf16.mxu0 0
        %1199 = vmatmul.mubr.bf16.gmra.mxu0 %v651
        %v1200 = vpop.f32.mrf.mxu0
        %v1201 = vadd.f32 0.0, %v1200
        %v1202 = vpop.f32.mrf.mxu0
        %v1203 = vpop.f32.mrf.mxu0
        %v1204 = vadd.f32 0.0, %v1203
        %v1205 = vpop.f32.mrf.mxu0
        %1206 = vmatprep.mubr.bf16.mxu0 0
        %1207 = vmatmul.mubr.bf16.gmra.mxu0 %v653
        %v1208 = vpop.f32.mrf.mxu0
        %v1209 = vadd.f32 0.0, %v1208
        %v1210 = vpop.f32.mrf.mxu0
        %v1211 = vpop.f32.mrf.mxu0
        %v1212 = vadd.f32 0.0, %v1211
        %v1213 = vpop.f32.mrf.mxu0
        %1214 = vmatprep.mubr.bf16.mxu0 0
        %1215 = vmatmul.mubr.bf16.gmra.mxu0 %v655
        %v1216 = vpop.f32.mrf.mxu0
        %v1217 = vadd.f32 0.0, %v1216
        %v1218 = vpop.f32.mrf.mxu0
        %v1219 = vpop.f32.mrf.mxu0
        %v1220 = vadd.f32 0.0, %v1219
        %v1221 = vpop.f32.mrf.mxu0
        %1222 = vmatprep.mubr.bf16.mxu0 0
        %1223 = vmatmul.mubr.bf16.gmra.mxu0 %v657
        %v1224 = vpop.f32.mrf.mxu0
        %v1225 = vadd.f32 0.0, %v1224
        %v1226 = vpop.f32.mrf.mxu0
        %v1227 = vpop.f32.mrf.mxu0
        %v1228 = vadd.f32 0.0, %v1227
        %v1229 = vpop.f32.mrf.mxu0
        %1230 = vmatprep.mubr.bf16.mxu0 0
        %1231 = vmatmul.mubr.bf16.gmra.mxu0 %v659
        %v1232 = vpop.f32.mrf.mxu0
        %v1233 = vadd.f32 0.0, %v1232
        %v1234 = vpop.f32.mrf.mxu0
        %v1235 = vpop.f32.mrf.mxu0
        %v1236 = vadd.f32 0.0, %v1235
        %v1237 = vpop.f32.mrf.mxu0
        %1238 = vmatprep.mubr.bf16.mxu0 0
        %1239 = vmatmul.mubr.bf16.gmra.mxu0 %v661
        %v1240 = vpop.f32.mrf.mxu0
        %v1241 = vadd.f32 0.0, %v1240
        %v1242 = vpop.f32.mrf.mxu0
        %v1243 = vpop.f32.mrf.mxu0
        %v1244 = vadd.f32 0.0, %v1243
        %v1245 = vpop.f32.mrf.mxu0
        %1246 = vmatprep.mubr.bf16.mxu0 0
        %1247 = vmatmul.mubr.bf16.gmra.mxu0 %v1153
        %v1248 = vpop.f32.mrf.mxu0
        %v1249 = vadd.f32 0.0, %v1248
        %v1250 = vpop.f32.mrf.mxu0
        %v1251 = vpop.f32.mrf.mxu0
        %v1252 = vadd.f32 0.0, %v1251
        %v1253 = vpop.f32.mrf.mxu0
        %1254 = vdwg.mxu0
        %v1255 = vadd.f32 %v1135, %v1193
        %v1256 = vadd.f32 %v1136, %v1196
        %v1257 = vadd.f32 %v1137, %v1201
        %v1258 = vadd.f32 %v1138, %v1204
        %v1259 = vadd.f32 %v1139, %v1209
        %v1260 = vadd.f32 %v1140, %v1212
        %v1261 = vadd.f32 %v1141, %v1217
        %v1262 = vadd.f32 %v1142, %v1220
        %v1263 = vadd.f32 %v1143, %v1225
        %v1264 = vadd.f32 %v1144, %v1228
        %v1265 = vadd.f32 %v1145, %v1233
        %v1266 = vadd.f32 %v1146, %v1236
        %v1267 = vadd.f32 %v1147, %v1241
        %v1268 = vadd.f32 %v1148, %v1244
        %v1269 = vadd.f32 %v1149, %v1249
        %v1270 = vadd.f32 %v1150, %v1252
        %s1271 = scalar_lea.vmem %s3, 10
        %v1272 = vld [vmem:[%s1271] sm:$0x3]
        %v1274 = vsel %vm646, %v641, 0
        %v1277 = vsel %vm663, %v1272, 0
        %1279 = vmatprep.subr.bf16.mxu0 0
        %1280 = vmatpush1.bf16.msra.mxu0 0
        %1281 = vmatprep.subr.bf16.mxu0 0
        %1282 = vmatpush1.bf16.msra.mxu0 0
        %1283 = vmatprep.subr.bf16.mxu0 0
        %1284 = vmatpush1.bf16.msra.mxu0 0
        %1285 = vmatprep.subr.bf16.mxu0 0
        %1286 = vmatpush1.bf16.msra.mxu0 0
        %1287 = vmatprep.subr.bf16.mxu0 0
        %1288 = vmatpush1.bf16.msra.mxu0 0
        %1289 = vmatprep.subr.bf16.mxu0 0
        %1290 = vmatpush1.bf16.msra.mxu0 0
        %1291 = vmatprep.subr.bf16.mxu0 0
        %1292 = vmatpush1.bf16.msra.mxu0 0
        %1293 = vmatprep.subr.bf16.mxu0 0
        %1294 = vmatpush1.bf16.msra.mxu0 %v1277
        %1295 = vmatprep.subr.bf16.mxu0 0
        %1296 = vmatpush2.bf16.msra.mxu0 0
        %1297 = vmatprep.subr.bf16.mxu0 0
        %1298 = vmatpush2.bf16.msra.mxu0 0
        %1299 = vmatprep.subr.bf16.mxu0 0
        %1300 = vmatpush2.bf16.msra.mxu0 0
        %1301 = vmatprep.subr.bf16.mxu0 0
        %1302 = vmatpush2.bf16.msra.mxu0 0
        %1303 = vmatprep.subr.bf16.mxu0 0
        %1304 = vmatpush2.bf16.msra.mxu0 0
        %1305 = vmatprep.subr.bf16.mxu0 0
        %1306 = vmatpush2.bf16.msra.mxu0 0
        %1307 = vmatprep.subr.bf16.mxu0 0
        %1308 = vmatpush2.bf16.msra.mxu0 0
        %1309 = vmatprep.subr.bf16.mxu0 0
        %1310 = vmatpush2.bf16.msra.mxu0 0
        %1311 = vmatprep.mubr.bf16.mxu0 0
        %1312 = vmatmul.mubr.bf16.gmra.mxu0 %v894
        %v1313 = vpop.f32.mrf.mxu0
        %v1314 = vadd.f32 0.0, %v1313
        %v1315 = vpop.f32.mrf.mxu0
        %v1316 = vpop.f32.mrf.mxu0
        %v1317 = vadd.f32 0.0, %v1316
        %v1318 = vpop.f32.mrf.mxu0
        %1319 = vmatprep.mubr.bf16.mxu0 0
        %1320 = vmatmul.mubr.bf16.gmra.mxu0 %v897
        %v1321 = vpop.f32.mrf.mxu0
        %v1322 = vadd.f32 0.0, %v1321
        %v1323 = vpop.f32.mrf.mxu0
        %v1324 = vpop.f32.mrf.mxu0
        %v1325 = vadd.f32 0.0, %v1324
        %v1326 = vpop.f32.mrf.mxu0
        %1327 = vmatprep.mubr.bf16.mxu0 0
        %1328 = vmatmul.mubr.bf16.gmra.mxu0 %v900
        %v1329 = vpop.f32.mrf.mxu0
        %v1330 = vadd.f32 0.0, %v1329
        %v1331 = vpop.f32.mrf.mxu0
        %v1332 = vpop.f32.mrf.mxu0
        %v1333 = vadd.f32 0.0, %v1332
        %v1334 = vpop.f32.mrf.mxu0
        %1335 = vmatprep.mubr.bf16.mxu0 0
        %1336 = vmatmul.mubr.bf16.gmra.mxu0 %v903
        %v1337 = vpop.f32.mrf.mxu0
        %v1338 = vadd.f32 0.0, %v1337
        %v1339 = vpop.f32.mrf.mxu0
        %v1340 = vpop.f32.mrf.mxu0
        %v1341 = vadd.f32 0.0, %v1340
        %v1342 = vpop.f32.mrf.mxu0
        %1343 = vmatprep.mubr.bf16.mxu0 0
        %1344 = vmatmul.mubr.bf16.gmra.mxu0 %v906
        %v1345 = vpop.f32.mrf.mxu0
        %v1346 = vadd.f32 0.0, %v1345
        %v1347 = vpop.f32.mrf.mxu0
        %v1348 = vpop.f32.mrf.mxu0
        %v1349 = vadd.f32 0.0, %v1348
        %v1350 = vpop.f32.mrf.mxu0
        %1351 = vmatprep.mubr.bf16.mxu0 0
        %1352 = vmatmul.mubr.bf16.gmra.mxu0 %v909
        %v1353 = vpop.f32.mrf.mxu0
        %v1354 = vadd.f32 0.0, %v1353
        %v1355 = vpop.f32.mrf.mxu0
        %v1356 = vpop.f32.mrf.mxu0
        %v1357 = vadd.f32 0.0, %v1356
        %v1358 = vpop.f32.mrf.mxu0
        %1359 = vmatprep.mubr.bf16.mxu0 0
        %1360 = vmatmul.mubr.bf16.gmra.mxu0 %v912
        %v1361 = vpop.f32.mrf.mxu0
        %v1362 = vadd.f32 0.0, %v1361
        %v1363 = vpop.f32.mrf.mxu0
        %v1364 = vpop.f32.mrf.mxu0
        %v1365 = vadd.f32 0.0, %v1364
        %v1366 = vpop.f32.mrf.mxu0
        %1367 = vmatprep.mubr.bf16.mxu0 0
        %1368 = vmatmul.mubr.bf16.gmra.mxu0 %v1274
        %v1369 = vpop.f32.mrf.mxu0
        %v1370 = vadd.f32 0.0, %v1369
        %v1371 = vpop.f32.mrf.mxu0
        %v1372 = vpop.f32.mrf.mxu0
        %v1373 = vadd.f32 0.0, %v1372
        %v1374 = vpop.f32.mrf.mxu0
        %1375 = vdwg.mxu0
        %v1376 = vadd.f32 %v1255, %v1314
        %v1377 = vadd.f32 %v1256, %v1317
        %v1378 = vadd.f32 %v1257, %v1322
        %v1379 = vadd.f32 %v1258, %v1325
        %v1380 = vadd.f32 %v1259, %v1330
        %v1381 = vadd.f32 %v1260, %v1333
        %v1382 = vadd.f32 %v1261, %v1338
        %v1383 = vadd.f32 %v1262, %v1341
        %v1384 = vadd.f32 %v1263, %v1346
        %v1385 = vadd.f32 %v1264, %v1349
        %v1386 = vadd.f32 %v1265, %v1354
        %v1387 = vadd.f32 %v1266, %v1357
        %v1388 = vadd.f32 %v1267, %v1362
        %v1389 = vadd.f32 %v1268, %v1365
        %v1390 = vadd.f32 %v1269, %v1370
        %v1391 = vadd.f32 %v1270, %v1373
        %s1392 = scalar_lea.vmem %s3, 12
        %v1393 = vld [vmem:[%s1392] sm:$0x3]
        %v1395 = vsel %vm646, %v599, 0
        %v1398 = vsel %vm663, %v1393, 0
        %1400 = vmatprep.subr.bf16.mxu0 0
        %1401 = vmatpush1.bf16.msra.mxu0 0
        %1402 = vmatprep.subr.bf16.mxu0 0
        %1403 = vmatpush1.bf16.msra.mxu0 0
        %1404 = vmatprep.subr.bf16.mxu0 0
        %1405 = vmatpush1.bf16.msra.mxu0 0
        %1406 = vmatprep.subr.bf16.mxu0 0
        %1407 = vmatpush1.bf16.msra.mxu0 0
        %1408 = vmatprep.subr.bf16.mxu0 0
        %1409 = vmatpush1.bf16.msra.mxu0 0
        %1410 = vmatprep.subr.bf16.mxu0 0
        %1411 = vmatpush1.bf16.msra.mxu0 0
        %1412 = vmatprep.subr.bf16.mxu0 0
        %1413 = vmatpush1.bf16.msra.mxu0 0
        %1414 = vmatprep.subr.bf16.mxu0 0
        %1415 = vmatpush1.bf16.msra.mxu0 %v1398
        %1416 = vmatprep.subr.bf16.mxu0 0
        %1417 = vmatpush2.bf16.msra.mxu0 0
        %1418 = vmatprep.subr.bf16.mxu0 0
        %1419 = vmatpush2.bf16.msra.mxu0 0
        %1420 = vmatprep.subr.bf16.mxu0 0
        %1421 = vmatpush2.bf16.msra.mxu0 0
        %1422 = vmatprep.subr.bf16.mxu0 0
        %1423 = vmatpush2.bf16.msra.mxu0 0
        %1424 = vmatprep.subr.bf16.mxu0 0
        %1425 = vmatpush2.bf16.msra.mxu0 0
        %1426 = vmatprep.subr.bf16.mxu0 0
        %1427 = vmatpush2.bf16.msra.mxu0 0
        %1428 = vmatprep.subr.bf16.mxu0 0
        %1429 = vmatpush2.bf16.msra.mxu0 0
        %1430 = vmatprep.subr.bf16.mxu0 0
        %1431 = vmatpush2.bf16.msra.mxu0 0
        %1432 = vmatprep.mubr.bf16.mxu0 0
        %1433 = vmatmul.mubr.bf16.gmra.mxu0 %v771
        %v1434 = vpop.f32.mrf.mxu0
        %v1435 = vadd.f32 0.0, %v1434
        %v1436 = vpop.f32.mrf.mxu0
        %v1437 = vpop.f32.mrf.mxu0
        %v1438 = vadd.f32 0.0, %v1437
        %v1439 = vpop.f32.mrf.mxu0
        %1440 = vmatprep.mubr.bf16.mxu0 0
        %1441 = vmatmul.mubr.bf16.gmra.mxu0 %v774
        %v1442 = vpop.f32.mrf.mxu0
        %v1443 = vadd.f32 0.0, %v1442
        %v1444 = vpop.f32.mrf.mxu0
        %v1445 = vpop.f32.mrf.mxu0
        %v1446 = vadd.f32 0.0, %v1445
        %v1447 = vpop.f32.mrf.mxu0
        %1448 = vmatprep.mubr.bf16.mxu0 0
        %1449 = vmatmul.mubr.bf16.gmra.mxu0 %v777
        %v1450 = vpop.f32.mrf.mxu0
        %v1451 = vadd.f32 0.0, %v1450
        %v1452 = vpop.f32.mrf.mxu0
        %v1453 = vpop.f32.mrf.mxu0
        %v1454 = vadd.f32 0.0, %v1453
        %v1455 = vpop.f32.mrf.mxu0
        %1456 = vmatprep.mubr.bf16.mxu0 0
        %1457 = vmatmul.mubr.bf16.gmra.mxu0 %v780
        %v1458 = vpop.f32.mrf.mxu0
        %v1459 = vadd.f32 0.0, %v1458
        %v1460 = vpop.f32.mrf.mxu0
        %v1461 = vpop.f32.mrf.mxu0
        %v1462 = vadd.f32 0.0, %v1461
        %v1463 = vpop.f32.mrf.mxu0
        %1464 = vmatprep.mubr.bf16.mxu0 0
        %1465 = vmatmul.mubr.bf16.gmra.mxu0 %v783
        %v1466 = vpop.f32.mrf.mxu0
        %v1467 = vadd.f32 0.0, %v1466
        %v1468 = vpop.f32.mrf.mxu0
        %v1469 = vpop.f32.mrf.mxu0
        %v1470 = vadd.f32 0.0, %v1469
        %v1471 = vpop.f32.mrf.mxu0
        %1472 = vmatprep.mubr.bf16.mxu0 0
        %1473 = vmatmul.mubr.bf16.gmra.mxu0 %v786
        %v1474 = vpop.f32.mrf.mxu0
        %v1475 = vadd.f32 0.0, %v1474
        %v1476 = vpop.f32.mrf.mxu0
        %v1477 = vpop.f32.mrf.mxu0
        %v1478 = vadd.f32 0.0, %v1477
        %v1479 = vpop.f32.mrf.mxu0
        %1480 = vmatprep.mubr.bf16.mxu0 0
        %1481 = vmatmul.mubr.bf16.gmra.mxu0 %v1033
        %v1482 = vpop.f32.mrf.mxu0
        %v1483 = vadd.f32 0.0, %v1482
        %v1484 = vpop.f32.mrf.mxu0
        %v1485 = vpop.f32.mrf.mxu0
        %v1486 = vadd.f32 0.0, %v1485
        %v1487 = vpop.f32.mrf.mxu0
        %1488 = vmatprep.mubr.bf16.mxu0 0
        %1489 = vmatmul.mubr.bf16.gmra.mxu0 %v1395
        %v1490 = vpop.f32.mrf.mxu0
        %v1491 = vadd.f32 0.0, %v1490
        %v1492 = vpop.f32.mrf.mxu0
        %v1493 = vpop.f32.mrf.mxu0
        %v1494 = vadd.f32 0.0, %v1493
        %v1495 = vpop.f32.mrf.mxu0
        %1496 = vdwg.mxu0
        %v1497 = vadd.f32 %v1376, %v1435
        %v1498 = vadd.f32 %v1377, %v1438
        %v1499 = vadd.f32 %v1378, %v1443
        %v1500 = vadd.f32 %v1379, %v1446
        %v1501 = vadd.f32 %v1380, %v1451
        %v1502 = vadd.f32 %v1381, %v1454
        %v1503 = vadd.f32 %v1382, %v1459
        %v1504 = vadd.f32 %v1383, %v1462
        %v1505 = vadd.f32 %v1384, %v1467
        %v1506 = vadd.f32 %v1385, %v1470
        %v1507 = vadd.f32 %v1386, %v1475
        %v1508 = vadd.f32 %v1387, %v1478
        %v1509 = vadd.f32 %v1388, %v1483
        %v1510 = vadd.f32 %v1389, %v1486
        %v1511 = vadd.f32 %v1390, %v1491
        %v1512 = vadd.f32 %v1391, %v1494
        %s1513 = scalar_lea.vmem %s3, 14
        %v1514 = vld [vmem:[%s1513] sm:$0x3]
        %v1515 = vsel %vm646, %v506, 0
        %v1518 = vsel %vm663, %v1514, 0
        %1520 = vmatprep.subr.bf16.mxu0 0
        %1521 = vmatpush1.bf16.msra.mxu0 0
        %1522 = vmatprep.subr.bf16.mxu0 0
        %1523 = vmatpush1.bf16.msra.mxu0 0
        %1524 = vmatprep.subr.bf16.mxu0 0
        %1525 = vmatpush1.bf16.msra.mxu0 0
        %1526 = vmatprep.subr.bf16.mxu0 0
        %1527 = vmatpush1.bf16.msra.mxu0 0
        %1528 = vmatprep.subr.bf16.mxu0 0
        %1529 = vmatpush1.bf16.msra.mxu0 0
        %1530 = vmatprep.subr.bf16.mxu0 0
        %1531 = vmatpush1.bf16.msra.mxu0 0
        %1532 = vmatprep.subr.bf16.mxu0 0
        %1533 = vmatpush1.bf16.msra.mxu0 0
        %1534 = vmatprep.subr.bf16.mxu0 0
        %1535 = vmatpush1.bf16.msra.mxu0 %v1518
        %1536 = vmatprep.subr.bf16.mxu0 0
        %1537 = vmatpush2.bf16.msra.mxu0 0
        %1538 = vmatprep.subr.bf16.mxu0 0
        %1539 = vmatpush2.bf16.msra.mxu0 0
        %1540 = vmatprep.subr.bf16.mxu0 0
        %1541 = vmatpush2.bf16.msra.mxu0 0
        %1542 = vmatprep.subr.bf16.mxu0 0
        %1543 = vmatpush2.bf16.msra.mxu0 0
        %1544 = vmatprep.subr.bf16.mxu0 0
        %1545 = vmatpush2.bf16.msra.mxu0 0
        %1546 = vmatprep.subr.bf16.mxu0 0
        %1547 = vmatpush2.bf16.msra.mxu0 0
        %1548 = vmatprep.subr.bf16.mxu0 0
        %1549 = vmatpush2.bf16.msra.mxu0 0
        %1550 = vmatprep.subr.bf16.mxu0 0
        %1551 = vmatpush2.bf16.msra.mxu0 0
        %1552 = vmatprep.mubr.bf16.mxu0 0
        %1553 = vmatmul.mubr.bf16.gmra.mxu0 %v651
        %v1554 = vpop.f32.mrf.mxu0
        %v1555 = vadd.f32 0.0, %v1554
        %v1556 = vpop.f32.mrf.mxu0
        %v1557 = vpop.f32.mrf.mxu0
        %v1558 = vadd.f32 0.0, %v1557
        %v1559 = vpop.f32.mrf.mxu0
        %1560 = vmatprep.mubr.bf16.mxu0 0
        %1561 = vmatmul.mubr.bf16.gmra.mxu0 %v653
        %v1562 = vpop.f32.mrf.mxu0
        %v1563 = vadd.f32 0.0, %v1562
        %v1564 = vpop.f32.mrf.mxu0
        %v1565 = vpop.f32.mrf.mxu0
        %v1566 = vadd.f32 0.0, %v1565
        %v1567 = vpop.f32.mrf.mxu0
        %1568 = vmatprep.mubr.bf16.mxu0 0
        %1569 = vmatmul.mubr.bf16.gmra.mxu0 %v655
        %v1570 = vpop.f32.mrf.mxu0
        %v1571 = vadd.f32 0.0, %v1570
        %v1572 = vpop.f32.mrf.mxu0
        %v1573 = vpop.f32.mrf.mxu0
        %v1574 = vadd.f32 0.0, %v1573
        %v1575 = vpop.f32.mrf.mxu0
        %1576 = vmatprep.mubr.bf16.mxu0 0
        %1577 = vmatmul.mubr.bf16.gmra.mxu0 %v657
        %v1578 = vpop.f32.mrf.mxu0
        %v1579 = vadd.f32 0.0, %v1578
        %v1580 = vpop.f32.mrf.mxu0
        %v1581 = vpop.f32.mrf.mxu0
        %v1582 = vadd.f32 0.0, %v1581
        %v1583 = vpop.f32.mrf.mxu0
        %1584 = vmatprep.mubr.bf16.mxu0 0
        %1585 = vmatmul.mubr.bf16.gmra.mxu0 %v659
        %v1586 = vpop.f32.mrf.mxu0
        %v1587 = vadd.f32 0.0, %v1586
        %v1588 = vpop.f32.mrf.mxu0
        %v1589 = vpop.f32.mrf.mxu0
        %v1590 = vadd.f32 0.0, %v1589
        %v1591 = vpop.f32.mrf.mxu0
        %1592 = vmatprep.mubr.bf16.mxu0 0
        %1593 = vmatmul.mubr.bf16.gmra.mxu0 %v661
        %v1594 = vpop.f32.mrf.mxu0
        %v1595 = vadd.f32 0.0, %v1594
        %v1596 = vpop.f32.mrf.mxu0
        %v1597 = vpop.f32.mrf.mxu0
        %v1598 = vadd.f32 0.0, %v1597
        %v1599 = vpop.f32.mrf.mxu0
        %1600 = vmatprep.mubr.bf16.mxu0 0
        %1601 = vmatmul.mubr.bf16.gmra.mxu0 %v1153
        %v1602 = vpop.f32.mrf.mxu0
        %v1603 = vadd.f32 0.0, %v1602
        %v1604 = vpop.f32.mrf.mxu0
        %v1605 = vpop.f32.mrf.mxu0
        %v1606 = vadd.f32 0.0, %v1605
        %v1607 = vpop.f32.mrf.mxu0
        %1608 = vmatprep.mubr.bf16.mxu0 0
        %1609 = vmatmul.mubr.bf16.gmra.mxu0 %v1515
        %v1610 = vpop.f32.mrf.mxu0
        %v1611 = vadd.f32 0.0, %v1610
        %v1612 = vpop.f32.mrf.mxu0
        %v1613 = vpop.f32.mrf.mxu0
        %v1614 = vadd.f32 0.0, %v1613
        %v1615 = vpop.f32.mrf.mxu0
        %1616 = vdwg.mxu0
        %v1617 = vadd.f32 %v1497, %v1555
        %v1618 = vadd.f32 %v1498, %v1558
        %v1619 = vadd.f32 %v1499, %v1563
        %v1620 = vadd.f32 %v1500, %v1566
        %v1621 = vadd.f32 %v1501, %v1571
        %v1622 = vadd.f32 %v1502, %v1574
        %v1623 = vadd.f32 %v1503, %v1579
        %v1624 = vadd.f32 %v1504, %v1582
        %v1625 = vadd.f32 %v1505, %v1587
        %v1626 = vadd.f32 %v1506, %v1590
        %v1627 = vadd.f32 %v1507, %v1595
        %v1628 = vadd.f32 %v1508, %v1598
        %v1629 = vadd.f32 %v1509, %v1603
        %v1630 = vadd.f32 %v1510, %v1606
        %v1631 = vadd.f32 %v1511, %v1611
        %v1632 = vadd.f32 %v1512, %v1614
        %s1633 = scalar_lea.vmem %s3, 16
        %v1634 = vld [vmem:[%s1633] sm:$0x3]
        %v1636 = vsel %vm646, %v642, 0
        %v1639 = vsel %vm663, %v1634, 0
        %1641 = vmatprep.subr.bf16.mxu0 0
        %1642 = vmatpush1.bf16.msra.mxu0 0
        %1643 = vmatprep.subr.bf16.mxu0 0
        %1644 = vmatpush1.bf16.msra.mxu0 0
        %1645 = vmatprep.subr.bf16.mxu0 0
        %1646 = vmatpush1.bf16.msra.mxu0 0
        %1647 = vmatprep.subr.bf16.mxu0 0
        %1648 = vmatpush1.bf16.msra.mxu0 0
        %1649 = vmatprep.subr.bf16.mxu0 0
        %1650 = vmatpush1.bf16.msra.mxu0 0
        %1651 = vmatprep.subr.bf16.mxu0 0
        %1652 = vmatpush1.bf16.msra.mxu0 0
        %1653 = vmatprep.subr.bf16.mxu0 0
        %1654 = vmatpush1.bf16.msra.mxu0 0
        %1655 = vmatprep.subr.bf16.mxu0 0
        %1656 = vmatpush1.bf16.msra.mxu0 %v1639
        %1657 = vmatprep.subr.bf16.mxu0 0
        %1658 = vmatpush2.bf16.msra.mxu0 0
        %1659 = vmatprep.subr.bf16.mxu0 0
        %1660 = vmatpush2.bf16.msra.mxu0 0
        %1661 = vmatprep.subr.bf16.mxu0 0
        %1662 = vmatpush2.bf16.msra.mxu0 0
        %1663 = vmatprep.subr.bf16.mxu0 0
        %1664 = vmatpush2.bf16.msra.mxu0 0
        %1665 = vmatprep.subr.bf16.mxu0 0
        %1666 = vmatpush2.bf16.msra.mxu0 0
        %1667 = vmatprep.subr.bf16.mxu0 0
        %1668 = vmatpush2.bf16.msra.mxu0 0
        %1669 = vmatprep.subr.bf16.mxu0 0
        %1670 = vmatpush2.bf16.msra.mxu0 0
        %1671 = vmatprep.subr.bf16.mxu0 0
        %1672 = vmatpush2.bf16.msra.mxu0 0
        %1673 = vmatprep.mubr.bf16.mxu0 0
        %1674 = vmatmul.mubr.bf16.gmra.mxu0 %v897
        %v1675 = vpop.f32.mrf.mxu0
        %v1676 = vadd.f32 0.0, %v1675
        %v1677 = vpop.f32.mrf.mxu0
        %v1678 = vpop.f32.mrf.mxu0
        %v1679 = vadd.f32 0.0, %v1678
        %v1680 = vpop.f32.mrf.mxu0
        %1681 = vmatprep.mubr.bf16.mxu0 0
        %1682 = vmatmul.mubr.bf16.gmra.mxu0 %v900
        %v1683 = vpop.f32.mrf.mxu0
        %v1684 = vadd.f32 0.0, %v1683
        %v1685 = vpop.f32.mrf.mxu0
        %v1686 = vpop.f32.mrf.mxu0
        %v1687 = vadd.f32 0.0, %v1686
        %v1688 = vpop.f32.mrf.mxu0
        %1689 = vmatprep.mubr.bf16.mxu0 0
        %1690 = vmatmul.mubr.bf16.gmra.mxu0 %v903
        %v1691 = vpop.f32.mrf.mxu0
        %v1692 = vadd.f32 0.0, %v1691
        %v1693 = vpop.f32.mrf.mxu0
        %v1694 = vpop.f32.mrf.mxu0
        %v1695 = vadd.f32 0.0, %v1694
        %v1696 = vpop.f32.mrf.mxu0
        %1697 = vmatprep.mubr.bf16.mxu0 0
        %1698 = vmatmul.mubr.bf16.gmra.mxu0 %v906
        %v1699 = vpop.f32.mrf.mxu0
        %v1700 = vadd.f32 0.0, %v1699
        %v1701 = vpop.f32.mrf.mxu0
        %v1702 = vpop.f32.mrf.mxu0
        %v1703 = vadd.f32 0.0, %v1702
        %v1704 = vpop.f32.mrf.mxu0
        %1705 = vmatprep.mubr.bf16.mxu0 0
        %1706 = vmatmul.mubr.bf16.gmra.mxu0 %v909
        %v1707 = vpop.f32.mrf.mxu0
        %v1708 = vadd.f32 0.0, %v1707
        %v1709 = vpop.f32.mrf.mxu0
        %v1710 = vpop.f32.mrf.mxu0
        %v1711 = vadd.f32 0.0, %v1710
        %v1712 = vpop.f32.mrf.mxu0
        %1713 = vmatprep.mubr.bf16.mxu0 0
        %1714 = vmatmul.mubr.bf16.gmra.mxu0 %v912
        %v1715 = vpop.f32.mrf.mxu0
        %v1716 = vadd.f32 0.0, %v1715
        %v1717 = vpop.f32.mrf.mxu0
        %v1718 = vpop.f32.mrf.mxu0
        %v1719 = vadd.f32 0.0, %v1718
        %v1720 = vpop.f32.mrf.mxu0
        %1721 = vmatprep.mubr.bf16.mxu0 0
        %1722 = vmatmul.mubr.bf16.gmra.mxu0 %v1274
        %v1723 = vpop.f32.mrf.mxu0
        %v1724 = vadd.f32 0.0, %v1723
        %v1725 = vpop.f32.mrf.mxu0
        %v1726 = vpop.f32.mrf.mxu0
        %v1727 = vadd.f32 0.0, %v1726
        %v1728 = vpop.f32.mrf.mxu0
        %1729 = vmatprep.mubr.bf16.mxu0 0
        %1730 = vmatmul.mubr.bf16.gmra.mxu0 %v1636
        %v1731 = vpop.f32.mrf.mxu0
        %v1732 = vadd.f32 0.0, %v1731
        %v1733 = vpop.f32.mrf.mxu0
        %v1734 = vpop.f32.mrf.mxu0
        %v1735 = vadd.f32 0.0, %v1734
        %v1736 = vpop.f32.mrf.mxu0
        %1737 = vdwg.mxu0
        %v1738 = vadd.f32 %v1617, %v1676
        %v1739 = vadd.f32 %v1618, %v1679
        %v1740 = vadd.f32 %v1619, %v1684
        %v1741 = vadd.f32 %v1620, %v1687
        %v1742 = vadd.f32 %v1621, %v1692
        %v1743 = vadd.f32 %v1622, %v1695
        %v1744 = vadd.f32 %v1623, %v1700
        %v1745 = vadd.f32 %v1624, %v1703
        %v1746 = vadd.f32 %v1625, %v1708
        %v1747 = vadd.f32 %v1626, %v1711
        %v1748 = vadd.f32 %v1627, %v1716
        %v1749 = vadd.f32 %v1628, %v1719
        %v1750 = vadd.f32 %v1629, %v1724
        %v1751 = vadd.f32 %v1630, %v1727
        %v1752 = vadd.f32 %v1631, %v1732
        %v1753 = vadd.f32 %v1632, %v1735
        %v1754 = vld [vmem:[%s4] sm:$0x1]
        %v1756 = vlaneseq
        %v1757 = vshrl.u32 %v1756, 7
        %v1758 = vsub.s32 0, %v1757
        %v1759 = vrot.slane %v1754, %v1758
        %v1761 = vadd.f32 %v1738, %v1759
        %v1762 = vadd.f32 %v1739, %v1759
        %v1763 = vadd.f32 %v1740, %v1759
        %v1764 = vadd.f32 %v1741, %v1759
        %v1765 = vadd.f32 %v1742, %v1759
        %v1766 = vadd.f32 %v1743, %v1759
        %v1767 = vadd.f32 %v1744, %v1759
        %v1768 = vadd.f32 %v1745, %v1759
        %v1769 = vadd.f32 %v1746, %v1759
        %v1770 = vadd.f32 %v1747, %v1759
        %v1771 = vadd.f32 %v1748, %v1759
        %v1772 = vadd.f32 %v1749, %v1759
        %v1773 = vadd.f32 %v1750, %v1759
        %v1774 = vadd.f32 %v1751, %v1759
        %v1775 = vadd.f32 %v1752, %v1759
        %v1776 = vadd.f32 %v1753, %v1759
        %v1777 = vmax.f32 %v1761, 0.0
        %v1778 = vmax.f32 %v1762, 0.0
        %v1779 = vmax.f32 %v1763, 0.0
        %v1780 = vmax.f32 %v1764, 0.0
        %v1781 = vmax.f32 %v1765, 0.0
        %v1782 = vmax.f32 %v1766, 0.0
        %v1783 = vmax.f32 %v1767, 0.0
        %v1784 = vmax.f32 %v1768, 0.0
        %v1785 = vmax.f32 %v1769, 0.0
        %v1786 = vmax.f32 %v1770, 0.0
        %v1787 = vmax.f32 %v1771, 0.0
        %v1788 = vmax.f32 %v1772, 0.0
        %v1789 = vmax.f32 %v1773, 0.0
        %v1790 = vmax.f32 %v1774, 0.0
        %v1791 = vmax.f32 %v1775, 0.0
        %v1792 = vmax.f32 %v1776, 0.0
        %v1793 = vpack.c.bf16 %v1778, %v1777
        %v1794 = vpack.c.bf16 %v1780, %v1779
        %v1795 = vpack.c.bf16 %v1782, %v1781
        %v1796 = vpack.c.bf16 %v1784, %v1783
        %v1797 = vpack.c.bf16 %v1786, %v1785
        %v1798 = vpack.c.bf16 %v1788, %v1787
        %v1799 = vpack.c.bf16 %v1790, %v1789
        %v1800 = vpack.c.bf16 %v1792, %v1791
        %v1809 = vunpack.c.l.b16 %v1793
        %v1810 = vunpack.c.h.b16 %v1793
        %v1811 = vunpack.c.l.b16 %v1794
        %v1812 = vunpack.c.h.b16 %v1794
        %v1813 = vunpack.c.l.b16 %v1795
        %v1814 = vunpack.c.h.b16 %v1795
        %v1815 = vunpack.c.l.b16 %v1796
        %v1816 = vunpack.c.h.b16 %v1796
        %v1817 = vunpack.c.l.b16 %v1797
        %v1818 = vunpack.c.h.b16 %v1797
        %v1819 = vunpack.c.l.b16 %v1798
        %v1820 = vunpack.c.h.b16 %v1798
        %v1821 = vunpack.c.l.b16 %v1799
        %v1822 = vunpack.c.h.b16 %v1799
        %v1823 = vunpack.c.l.b16 %v1800
        %v1824 = vunpack.c.h.b16 %v1800
        %v1825 = vpack.c.b16 %v1809, %v1809
        %v1826 = vpack.c.b16 %v1810, %v1810
        %v1827 = vpack.c.b16 %v1811, %v1811
        %v1828 = vpack.c.b16 %v1812, %v1812
        %v1829 = vpack.c.b16 %v1813, %v1813
        %v1830 = vpack.c.b16 %v1814, %v1814
        %v1831 = vpack.c.b16 %v1815, %v1815
        %v1832 = vpack.c.b16 %v1816, %v1816
        %v1833 = vpack.c.b16 %v1817, %v1817
        %v1834 = vpack.c.b16 %v1818, %v1818
        %v1835 = vpack.c.b16 %v1819, %v1819
        %v1836 = vpack.c.b16 %v1820, %v1820
        %v1837 = vpack.c.b16 %v1821, %v1821
        %v1838 = vpack.c.b16 %v1822, %v1822
        %v1839 = vpack.c.b16 %v1823, %v1823
        %v1840 = vpack.c.b16 %v1824, %v1824
        %vm1857 = vcmask 519168
        %1858 = vst.msk [vmem:[%s334] sm:$0xf] %vm1857, %v1825
        %1859 = vst.msk [vmem:[%s334 + $0x4] sm:$0xf] %vm1857, %v1826
        %1860 = vst.msk [vmem:[%s334 + $0x8] sm:$0xf] %vm1857, %v1827
        %1861 = vst.msk [vmem:[%s334 + $0xc] sm:$0xf] %vm1857, %v1828
        %1862 = vst.msk [vmem:[%s334 + $0x10] sm:$0xf] %vm1857, %v1829
        %1863 = vst.msk [vmem:[%s334 + $0x14] sm:$0xf] %vm1857, %v1830
        %1864 = vst.msk [vmem:[%s334 + $0x18] sm:$0xf] %vm1857, %v1831
        %1865 = vst.msk [vmem:[%s334 + $0x1c] sm:$0xf] %vm1857, %v1832
        %1866 = vst.msk [vmem:[%s334 + $0x20] sm:$0xf] %vm1857, %v1833
        %1867 = vst.msk [vmem:[%s334 + $0x24] sm:$0xf] %vm1857, %v1834
        %1868 = vst.msk [vmem:[%s334 + $0x28] sm:$0xf] %vm1857, %v1835
        %1869 = vst.msk [vmem:[%s334 + $0x2c] sm:$0xf] %vm1857, %v1836
        %1870 = vst.msk [vmem:[%s334 + $0x30] sm:$0xf] %vm1857, %v1837
        %1871 = vst.msk [vmem:[%s334 + $0x34] sm:$0xf] %vm1857, %v1838
        %1872 = vst.msk [vmem:[%s334 + $0x38] sm:$0xf] %vm1857, %v1839
        %1873 = vst.msk [vmem:[%s334 + $0x3c] sm:$0xf] %vm1857, %v1840
        %s1874 = sand.u32 %s183, 1
        %s1875 = scalar_lea.sflag [#allocation4], %s1874
        %s1876 = sand.u32 %s183, 1
        %s1877 = smul.addr %s1876, 64
        %s1878 = scalar_lea.vmem [#allocation3], %s1877
        // Predicated region
        $region41: #{tpu_custom_call.1} parent=39 // pred_check
          %p1879 = pneg %p193
        $region42: #{tpu_custom_call.1} parent=39 // pred_check_branch
          %1881 = sbr.rel (%p1879) target = $region44
        $region43: #{tpu_custom_call.1} parent=39 // pred_region
          %s1882 = smul.u32 8, %s24
          %s1884 = ssub.s32 1024, 1024
          %1885 = vsyncadd %s1875, %s1884
          %s1886 = smul.addr %s1882, 2
          %s1887 = smul.addr %s23, 32
          %s1888 = sadd.s32 %s1886, %s1887
          %s1889 = smul.addr %s1888, 64
          %s1890 = scalar_lea.hbm %s5, %s1889
          %s1891 = sshll.u32 %s1878, 4
          %s1892 = int_to_ptr.vmem [resolvable:$true] %s1891
          %1897 = dma.vmem_to_hbm [thread:$0]  %s1892, 1024, %s1890, %s1875, 64, 64, 4
        $region44: #{tpu_custom_call.1} parent=39 // pred_fallthru
          _
      $region40: #{tpu_custom_call.1} parent=5 // pred_fallthru
        _
      %p1898 = scmp.le.s32.totalorder 2, %s14
      // Predicated region
      $region45: #{tpu_custom_call.1} parent=5 // pred_check
        %p1899 = pneg %p1898
      $region46: #{tpu_custom_call.1} parent=5 // pred_check_branch
        %1901 = sbr.rel (%p1899) target = $region48
      $region47: #{tpu_custom_call.1} parent=5 // pred_region
        %s1902 = ssub.s32 %s14, 2
        // Predicated region
        $region49: #{tpu_custom_call.1} parent=47 // pred_check
          %p1903 = pneg %p199
        $region50: #{tpu_custom_call.1} parent=47 // pred_check_branch
          %1905 = sbr.rel (%p1903) target = $region52
        $region51: #{tpu_custom_call.1} parent=47 // pred_region
          %s1906 = sand.u32 %s184, 1
          %s1907 = scalar_lea.sflag [#allocation4], %s1906
          %s1908 = sand.u32 %s184, 1
          %s1909 = smul.addr %s1908, 64
          %s1910 = scalar_lea.vmem [#allocation3], %s1909
          %1911 = dma.done %s1907, 1024
        $region52: #{tpu_custom_call.1} parent=47 // pred_fallthru
          _
      $region48: #{tpu_custom_call.1} parent=5 // pred_fallthru
        _
    $region6: #{tpu_custom_call.1} parent=1 // loop_footer
      %s18 = sadd.s32 1, %s14
    $region7: #{tpu_custom_call.1} parent=1 // loop_footer_branch
      %13 = sbr.rel target = $region3
    $region8: #{tpu_custom_call.1} parent=1 // loop_exit
      _
    %1912 = vsyncpa [#allocation4], 1
    %s1913 = scalar_lea.sflag [#allocation4], 1
    %1914 = vsyncpa %s1913, 1

</llo_original>
